<compile_context>
chip_gen: v5e
topology: v5e:2x2
jax: 0.10.0
libtpu: 0.0.40
codegen_flags: <defaults>
</compile_context>

<pallas_src>
import jax
import jax.numpy as jnp
from jax.experimental import pallas as pl
from jax.experimental.pallas import tpu as pltpu

BN_EPS = 1e-5
K = 7          # Conv1d kernel size
HALO = 3       # Conv1d padding
L = 512        # Linear(128 -> 512) output width == conv length
F_IN = 128     # Linear input width


def _vmem():
    # whole-array block resident in VMEM (everything here is tiny)
    return pl.BlockSpec(memory_space=pltpu.MemorySpace.VMEM)


# ---------------------------------------------------------------------------
# One (Conv1d(k=7,p=3) -> BatchNorm1d(batch stats) -> ReLU) stage, traced
# inline.  x is a value (C_in, B*L) slab resident in vregs; masks are the
# K precomputed per-shift edge masks (shape (1, B*L) bool, or None).
# Returns (C_out, B*L).
# ---------------------------------------------------------------------------
def _conv_bn_relu(x, masks, w_ref, b_ref, g_ref, beta_ref):
    n_lanes = x.shape[1]

    # im2col via lane rotations (XLU) + edge masking (VPU select) -- no
    # unaligned slices, no halo scratch.
    wins = []
    for k in range(K):
        s = HALO - k
        if s == 0:
            r = x
        else:
            r = pltpu.roll(x, shift=s % n_lanes, axis=1)
        if masks[k] is not None:
            r = jnp.where(masks[k], r, 0.0)
        wins.append(r)
    win = jnp.concatenate(wins, axis=0)                     # (K*C_in, B*L)

    # single MXU dot for the whole stage (all batches at once)
    y = jnp.dot(w_ref[...], win,
                preferred_element_type=jnp.float32) + b_ref[...]   # (C_out, B*L)

    # BatchNorm1d (training mode): per-channel stats over (batch, length),
    # biased variance, centered two-pass for numerical safety.
    inv_n = 1.0 / float(n_lanes)
    mean = jnp.sum(y, axis=1, keepdims=True) * inv_n        # (C_out, 1)
    yc = y - mean
    var = jnp.sum(yc * yc, axis=1, keepdims=True) * inv_n
    scale = g_ref[...] * jax.lax.rsqrt(var + BN_EPS)        # (C_out, 1)
    return jnp.maximum(yc * scale + beta_ref[...], 0.0)


# ---------------------------------------------------------------------------
# Fully fused Up.forward kernel
#   lhs_ref   : (B*C_in, 2*F_IN) block-diagonal packed linear input
#               (row b*C_in+c; x2 features in lanes 0:128, x1 in lanes 128:256)
#   lbias_ref : (B*C_in, L) per-row linear bias slab
#   wf_ref    : (2*F_IN, L) vstack([up1_w.T, up_w.T])
#   c*w_ref   : (C_out, K*C) im2col-packed conv weights (col index = k*C + c)
#   c*b/g/bb  : (C_out, 1)
#   o_ref     : (C_out, B*L) lane-dense output
# ---------------------------------------------------------------------------
def up_fused_kernel(lhs_ref, lbias_ref, wf_ref,
                    c1w_ref, c1b_ref, g1_ref, bb1_ref,
                    c2w_ref, c2b_ref, g2_ref, bb2_ref,
                    o_ref):
    c_out, n_lanes = o_ref.shape
    b_sz = n_lanes // L
    c_in = lhs_ref.shape[0] // b_sz

    # --- both Linear(128->512) layers: ONE block-diagonal MXU dot ---
    # Output rows are already in cat([x2, x1], dim=1) channel order per batch.
    ylin = jnp.dot(lhs_ref[...], wf_ref[...],
                   preferred_element_type=jnp.float32) + lbias_ref[...]
    # (B*C_in, L).  diffY == 0, so F.pad(x1, ...) is the identity.

    # --- repack to channel-major, batch-along-lanes slab (C_in, B*L) ---
    # lane concat offsets are multiples of 512 -> aligned.
    payload = jnp.concatenate(
        [ylin[b * c_in:(b + 1) * c_in, :] for b in range(b_sz)], axis=1)

    # --- loop-invariant edge masks for the K rolled windows (hoisted) ---
    pos = jax.lax.broadcasted_iota(jnp.int32, (1, n_lanes), 1) % L
    masks = []
    for k in range(K):
        s = HALO - k
        if s > 0:
            masks.append(pos >= s)
        elif s < 0:
            masks.append(pos < (L + s))
        else:
            masks.append(None)

    # --- stage 1 & 2: Conv1d -> BN -> ReLU ---
    h = _conv_bn_relu(payload, masks, c1w_ref, c1b_ref, g1_ref, bb1_ref)
    o_ref[...] = _conv_bn_relu(h, masks, c2w_ref, c2b_ref, g2_ref, bb2_ref)


# ---------------------------------------------------------------------------
# Wrapper: pack inputs once, one pallas_call, 16 KB transpose on the output
# ---------------------------------------------------------------------------
def up_forward(packed, x1, x2):
    B, C1, F1 = x1.shape
    _, C2, F2 = x2.shape
    assert F1 == F_IN and F2 == F_IN, (F1, F2)
    C_in = C1 + C2
    C_out = packed["c1_w"].shape[0]
    assert packed["c1_w"].shape[1] == K * C_in, "conv1 in_channels != C1 + C2"

    # block-diagonal LHS: rows in cat([x2, x1], dim=1) channel order,
    # x2 features in lanes 0:128, x1 features in lanes 128:256
    z2 = jnp.concatenate([x2, jnp.zeros_like(x2)], axis=-1)       # (B, C2, 256)
    z1 = jnp.concatenate([jnp.zeros_like(x1), x1], axis=-1)       # (B, C1, 256)
    lhs = jnp.concatenate([z2, z1], axis=1).reshape(B * C_in, 2 * F_IN)

    # matching per-row linear bias slab
    bias_rows = jnp.concatenate(
        [jnp.broadcast_to(packed["up1_b_row"], (C2, L)),
         jnp.broadcast_to(packed["up_b_row"], (C1, L))], axis=0)  # (C_in, L)
    lbias = jnp.tile(bias_rows, (B, 1))                           # (B*C_in, L)

    out = pl.pallas_call(
        up_fused_kernel,
        out_shape=jax.ShapeDtypeStruct((C_out, B * L), jnp.float32),
        in_specs=[_vmem()] * 11,
        out_specs=_vmem(),
    )(lhs, lbias, packed["w_fused"],
      packed["c1_w"], packed["c1_b"], packed["bn1_g"], packed["bn1_b"],
      packed["c2_w"], packed["c2_b"], packed["bn2_g"], packed["bn2_b"])

    # (C_out, B*L) -> (B, C_out, L)
    return out.reshape(C_out, B, L).transpose(1, 0, 2)


# ---------------------------------------------------------------------------
# Params: torch layout -> packed-once kernel layout
# ---------------------------------------------------------------------------
def init_params(key, in_channels, out_channels):
    ks = jax.random.split(key, 8)
    return {
        "up_w": 0.05 * jax.random.normal(ks[0], (L, F_IN), jnp.float32),
        "up_b": 0.05 * jax.random.normal(ks[1], (L,), jnp.float32),
        "up1_w": 0.05 * jax.random.normal(ks[2], (L, F_IN), jnp.float32),
        "up1_b": 0.05 * jax.random.normal(ks[3], (L,), jnp.float32),
        "c1_w": 0.1 * jax.random.normal(ks[4], (out_channels, in_channels, K), jnp.float32),
        "c1_b": 0.05 * jax.random.normal(ks[5], (out_channels,), jnp.float32),
        "c2_w": 0.1 * jax.random.normal(ks[6], (out_channels, out_channels, K), jnp.float32),
        "c2_b": 0.05 * jax.random.normal(ks[7], (out_channels,), jnp.float32),
        "bn1_g": jnp.ones((out_channels,), jnp.float32),
        "bn1_b": jnp.zeros((out_channels,), jnp.float32),
        "bn2_g": jnp.ones((out_channels,), jnp.float32),
        "bn2_b": jnp.zeros((out_channels,), jnp.float32),
    }


def pack_params(p):
    def pack_conv(w):   # (C_out, C_in, K) -> (C_out, K*C_in), col index = k*C_in + c
        co, ci, kk = w.shape
        return jnp.transpose(w, (0, 2, 1)).reshape(co, kk * ci)

    col = lambda v: v.reshape(-1, 1)
    return {
        # block-diagonal fused linear weight: rows 0:128 -> up1 (x2),
        # rows 128:256 -> up (x1)
        "w_fused": jnp.concatenate([p["up1_w"].T, p["up_w"].T], axis=0),  # (256, 512)
        "up_b_row": p["up_b"].reshape(1, L),
        "up1_b_row": p["up1_b"].reshape(1, L),
        "c1_w": pack_conv(p["c1_w"]), "c1_b": col(p["c1_b"]),
        "bn1_g": col(p["bn1_g"]), "bn1_b": col(p["bn1_b"]),
        "c2_w": pack_conv(p["c2_w"]), "c2_b": col(p["c2_b"]),
        "bn2_g": col(p["bn2_g"]), "bn2_b": col(p["bn2_b"]),
    }


# ---------------------------------------------------------------------------
# Pure-JAX reference (torch-layout params) for correctness validation
# ---------------------------------------------------------------------------
def up_reference(p, x1, x2):
    hp = jax.lax.Precision.HIGHEST
    y1 = jnp.einsum("bcf,of->bco", x1, p["up_w"], precision=hp) + p["up_b"]
    y2 = jnp.einsum("bcf,of->bco", x2, p["up1_w"], precision=hp) + p["up1_b"]
    x = jnp.concatenate([y2, y1], axis=1)                       # (B, C_in, 512)

    def conv_bn_relu(x, w, b, g, beta):
        Lx = x.shape[-1]
        xp = jnp.pad(x, ((0, 0), (0, 0), (HALO, HALO)))
        y = b[None, :, None] + sum(
            jnp.einsum("oc,bcl->bol", w[:, :, k], xp[:, :, k:k + Lx], precision=hp)
            for k in range(K))
        mean = y.mean(axis=(0, 2), keepdims=True)
        var = ((y - mean) ** 2).mean(axis=(0, 2), keepdims=True)
        yn = (y - mean) * jax.lax.rsqrt(var + BN_EPS)
        return jnp.maximum(yn * g[None, :, None] + beta[None, :, None], 0.0)

    h = conv_bn_relu(x, p["c1_w"], p["c1_b"], p["bn1_g"], p["bn1_b"])
    return conv_bn_relu(h, p["c2_w"], p["c2_b"], p["bn2_g"], p["bn2_b"])


if __name__ == "__main__":
    key = jax.random.PRNGKey(0)
    k1, k2, kp = jax.random.split(key, 3)

    B, C1, C2 = 2, 2, 2                 # x1 / x2 channel counts
    in_ch = C1 + C2                     # channels after cat([x2, x1], dim=1)
    out_ch = 4

    x1 = jax.random.normal(k1, (B, C1, F_IN), jnp.float32)
    x2 = jax.random.normal(k2, (B, C2, F_IN), jnp.float32)

    raw = init_params(kp, in_ch, out_ch)
    packed = pack_params(raw)

    out = jax.block_until_ready(up_forward(packed, x1, x2))

    assert out.shape == (B, out_ch, L), out.shape
    assert bool(jnp.all(jnp.isfinite(out)))

    ref = up_reference(raw, x1, x2)
    max_err = float(jnp.max(jnp.abs(out - ref)))
    assert max_err < 1e-2, f"mismatch vs reference: max|err| = {max_err}"

    print("KERNEL_OK")
</pallas_src>

<mosaic_0001>
module attributes {stable_mosaic.version = 11 : i64} {
  func.func @up_fused_kernel(%arg0: memref<8x256xf32, #tpu.memory_space<vmem>>, %arg1: memref<8x512xf32, #tpu.memory_space<vmem>>, %arg2: memref<256x512xf32, #tpu.memory_space<vmem>>, %arg3: memref<4x28xf32, #tpu.memory_space<vmem>>, %arg4: memref<4x1xf32, #tpu.memory_space<vmem>>, %arg5: memref<4x1xf32, #tpu.memory_space<vmem>>, %arg6: memref<4x1xf32, #tpu.memory_space<vmem>>, %arg7: memref<4x28xf32, #tpu.memory_space<vmem>>, %arg8: memref<4x1xf32, #tpu.memory_space<vmem>>, %arg9: memref<4x1xf32, #tpu.memory_space<vmem>>, %arg10: memref<4x1xf32, #tpu.memory_space<vmem>>, %arg11: memref<4x1024xf32, #tpu.memory_space<vmem>>) attributes {dimension_semantics = [], scalar_prefetch = 0 : i64, scratch_operands = 0 : i64, tpu.core_type = #tpu.core_type<tc>} {
    %c0 = arith.constant 0 : index
    %c0_0 = arith.constant 0 : index
    %0 = vector.load %arg0[%c0, %c0_0] : memref<8x256xf32, #tpu.memory_space<vmem>>, vector<8x256xf32>
    %c0_1 = arith.constant 0 : index
    %c0_2 = arith.constant 0 : index
    %1 = vector.load %arg2[%c0_1, %c0_2] : memref<256x512xf32, #tpu.memory_space<vmem>>, vector<256x512xf32>
    %cst = arith.constant dense<0.000000e+00> : vector<8x512xf32>
    %2 = tpu.matmul %0, %1, %cst {dimension_numbers = #tpu.dot_dimension_numbers<[1], [0], [0], [1], [0, 0, 1, 1], [], []>} : vector<8x256xf32>, vector<256x512xf32>, vector<8x512xf32> -> vector<8x512xf32>
    %c0_3 = arith.constant 0 : index
    %c0_4 = arith.constant 0 : index
    %3 = vector.load %arg1[%c0_3, %c0_4] : memref<8x512xf32, #tpu.memory_space<vmem>>, vector<8x512xf32>
    %4 = arith.addf %2, %3 : vector<8x512xf32>
    %5 = vector.extract_strided_slice %4 {offsets = [0, 0], sizes = [4, 512], strides = [1, 1]} : vector<8x512xf32> to vector<4x512xf32>
    %6 = vector.extract_strided_slice %4 {offsets = [4, 0], sizes = [4, 512], strides = [1, 1]} : vector<8x512xf32> to vector<4x512xf32>
    %7 = tpu.concatenate %5, %6 in 1 : vector<4x512xf32>, vector<4x512xf32> -> vector<4x1024xf32>
    %8 = tpu.iota {dimensions = array<i32: 1>} : vector<1x1024xi32>
    %c512_i32 = arith.constant 512 : i32
    %c0_i32 = arith.constant 0 : i32
    %9 = arith.cmpi eq, %c512_i32, %c0_i32 : i32
    %c1_i32 = arith.constant 1 : i32
    %10 = arith.select %9, %c1_i32, %c512_i32 : i32
    %11 = vector.broadcast %10 : i32 to vector<1x1024xi32>
    %12 = arith.remsi %8, %11 : vector<1x1024xi32>
    %c0_i32_5 = arith.constant 0 : i32
    %13 = vector.broadcast %c0_i32_5 : i32 to vector<1x1024xi32>
    %14 = arith.cmpi ne, %12, %13 : vector<1x1024xi32>
    %c0_i32_6 = arith.constant 0 : i32
    %15 = vector.broadcast %c0_i32_6 : i32 to vector<1x1024xi32>
    %16 = arith.cmpi slt, %12, %15 : vector<1x1024xi32>
    %c0_i32_7 = arith.constant 0 : i32
    %17 = arith.cmpi slt, %10, %c0_i32_7 : i32
    %18 = vector.broadcast %17 : i1 to vector<1x1024xi1>
    %19 = vector.broadcast %18 : vector<1x1024xi1> to vector<1x1024xi1>
    %20 = arith.xori %16, %19 : vector<1x1024xi1>
    %21 = arith.andi %20, %14 : vector<1x1024xi1>
    %22 = vector.broadcast %10 : i32 to vector<1x1024xi32>
    %23 = arith.addi %12, %22 : vector<1x1024xi32>
    %24 = arith.select %21, %23, %12 : vector<1x1024xi1>, vector<1x1024xi32>
    %c3_i32 = arith.constant 3 : i32
    %25 = vector.broadcast %c3_i32 : i32 to vector<1x1024xi32>
    %26 = arith.cmpi sge, %24, %25 : vector<1x1024xi32>
    %c2_i32 = arith.constant 2 : i32
    %27 = vector.broadcast %c2_i32 : i32 to vector<1x1024xi32>
    %28 = arith.cmpi sge, %24, %27 : vector<1x1024xi32>
    %c1_i32_8 = arith.constant 1 : i32
    %29 = vector.broadcast %c1_i32_8 : i32 to vector<1x1024xi32>
    %30 = arith.cmpi sge, %24, %29 : vector<1x1024xi32>
    %c511_i32 = arith.constant 511 : i32
    %31 = vector.broadcast %c511_i32 : i32 to vector<1x1024xi32>
    %32 = arith.cmpi slt, %24, %31 : vector<1x1024xi32>
    %c510_i32 = arith.constant 510 : i32
    %33 = vector.broadcast %c510_i32 : i32 to vector<1x1024xi32>
    %34 = arith.cmpi slt, %24, %33 : vector<1x1024xi32>
    %c509_i32 = arith.constant 509 : i32
    %35 = vector.broadcast %c509_i32 : i32 to vector<1x1024xi32>
    %36 = arith.cmpi slt, %24, %35 : vector<1x1024xi32>
    %c3_i32_9 = arith.constant 3 : i32
    %37 = tpu.dynamic_rotate %7 by %c3_i32_9 dim 1 : vector<4x1024xf32>, i32 -> vector<4x1024xf32>
    %cst_10 = arith.constant 0.000000e+00 : f32
    %38 = vector.shape_cast %26 : vector<1x1024xi1> to vector<1x1024xi1>
    %39 = vector.broadcast %38 : vector<1x1024xi1> to vector<4x1024xi1>
    %40 = vector.broadcast %cst_10 : f32 to vector<4x1024xf32>
    %41 = arith.select %39, %37, %40 : vector<4x1024xi1>, vector<4x1024xf32>
    %c2_i32_11 = arith.constant 2 : i32
    %42 = tpu.dynamic_rotate %7 by %c2_i32_11 dim 1 : vector<4x1024xf32>, i32 -> vector<4x1024xf32>
    %cst_12 = arith.constant 0.000000e+00 : f32
    %43 = vector.shape_cast %28 : vector<1x1024xi1> to vector<1x1024xi1>
    %44 = vector.broadcast %43 : vector<1x1024xi1> to vector<4x1024xi1>
    %45 = vector.broadcast %cst_12 : f32 to vector<4x1024xf32>
    %46 = arith.select %44, %42, %45 : vector<4x1024xi1>, vector<4x1024xf32>
    %c1_i32_13 = arith.constant 1 : i32
    %47 = tpu.dynamic_rotate %7 by %c1_i32_13 dim 1 : vector<4x1024xf32>, i32 -> vector<4x1024xf32>
    %cst_14 = arith.constant 0.000000e+00 : f32
    %48 = vector.shape_cast %30 : vector<1x1024xi1> to vector<1x1024xi1>
    %49 = vector.broadcast %48 : vector<1x1024xi1> to vector<4x1024xi1>
    %50 = vector.broadcast %cst_14 : f32 to vector<4x1024xf32>
    %51 = arith.select %49, %47, %50 : vector<4x1024xi1>, vector<4x1024xf32>
    %c1023_i32 = arith.constant 1023 : i32
    %52 = tpu.dynamic_rotate %7 by %c1023_i32 dim 1 : vector<4x1024xf32>, i32 -> vector<4x1024xf32>
    %cst_15 = arith.constant 0.000000e+00 : f32
    %53 = vector.shape_cast %32 : vector<1x1024xi1> to vector<1x1024xi1>
    %54 = vector.broadcast %53 : vector<1x1024xi1> to vector<4x1024xi1>
    %55 = vector.broadcast %cst_15 : f32 to vector<4x1024xf32>
    %56 = arith.select %54, %52, %55 : vector<4x1024xi1>, vector<4x1024xf32>
    %c1022_i32 = arith.constant 1022 : i32
    %57 = tpu.dynamic_rotate %7 by %c1022_i32 dim 1 : vector<4x1024xf32>, i32 -> vector<4x1024xf32>
    %cst_16 = arith.constant 0.000000e+00 : f32
    %58 = vector.shape_cast %34 : vector<1x1024xi1> to vector<1x1024xi1>
    %59 = vector.broadcast %58 : vector<1x1024xi1> to vector<4x1024xi1>
    %60 = vector.broadcast %cst_16 : f32 to vector<4x1024xf32>
    %61 = arith.select %59, %57, %60 : vector<4x1024xi1>, vector<4x1024xf32>
    %c1021_i32 = arith.constant 1021 : i32
    %62 = tpu.dynamic_rotate %7 by %c1021_i32 dim 1 : vector<4x1024xf32>, i32 -> vector<4x1024xf32>
    %cst_17 = arith.constant 0.000000e+00 : f32
    %63 = vector.shape_cast %36 : vector<1x1024xi1> to vector<1x1024xi1>
    %64 = vector.broadcast %63 : vector<1x1024xi1> to vector<4x1024xi1>
    %65 = vector.broadcast %cst_17 : f32 to vector<4x1024xf32>
    %66 = arith.select %64, %62, %65 : vector<4x1024xi1>, vector<4x1024xf32>
    %67 = tpu.concatenate %41, %46, %51, %7, %56, %61, %66 in 0 : vector<4x1024xf32>, vector<4x1024xf32>, vector<4x1024xf32>, vector<4x1024xf32>, vector<4x1024xf32>, vector<4x1024xf32>, vector<4x1024xf32> -> vector<28x1024xf32>
    %c0_18 = arith.constant 0 : index
    %c0_19 = arith.constant 0 : index
    %68 = vector.load %arg3[%c0_18, %c0_19] : memref<4x28xf32, #tpu.memory_space<vmem>>, vector<4x28xf32>
    %cst_20 = arith.constant dense<0.000000e+00> : vector<4x1024xf32>
    %69 = tpu.matmul %68, %67, %cst_20 {dimension_numbers = #tpu.dot_dimension_numbers<[1], [0], [0], [1], [0, 0, 1, 1], [], []>} : vector<4x28xf32>, vector<28x1024xf32>, vector<4x1024xf32> -> vector<4x1024xf32>
    %c0_21 = arith.constant 0 : index
    %c0_22 = arith.constant 0 : index
    %70 = vector.load %arg4[%c0_21, %c0_22] : memref<4x1xf32, #tpu.memory_space<vmem>>, vector<4x1xf32>
    %71 = vector.broadcast %70 : vector<4x1xf32> to vector<4x1024xf32>
    %72 = arith.addf %69, %71 : vector<4x1024xf32>
    %cst_23 = arith.constant dense<0.000000e+00> : vector<4xf32>
    %73 = vector.multi_reduction <add>, %72, %cst_23 [1] : vector<4x1024xf32> to vector<4xf32>
    %74 = vector.shape_cast %73 : vector<4xf32> to vector<4x1xf32>
    %cst_24 = arith.constant 9.765625E-4 : f32
    %75 = vector.broadcast %cst_24 : f32 to vector<4x1xf32>
    %76 = arith.mulf %74, %75 : vector<4x1xf32>
    %77 = vector.broadcast %76 : vector<4x1xf32> to vector<4x1024xf32>
    %78 = arith.subf %72, %77 : vector<4x1024xf32>
    %79 = arith.mulf %78, %78 : vector<4x1024xf32>
    %cst_25 = arith.constant dense<0.000000e+00> : vector<4xf32>
    %80 = vector.multi_reduction <add>, %79, %cst_25 [1] : vector<4x1024xf32> to vector<4xf32>
    %81 = vector.shape_cast %80 : vector<4xf32> to vector<4x1xf32>
    %cst_26 = arith.constant 9.765625E-4 : f32
    %82 = vector.broadcast %cst_26 : f32 to vector<4x1xf32>
    %83 = arith.mulf %81, %82 : vector<4x1xf32>
    %c0_27 = arith.constant 0 : index
    %c0_28 = arith.constant 0 : index
    %84 = vector.load %arg5[%c0_27, %c0_28] : memref<4x1xf32, #tpu.memory_space<vmem>>, vector<4x1xf32>
    %cst_29 = arith.constant 9.99999974E-6 : f32
    %85 = vector.broadcast %cst_29 : f32 to vector<4x1xf32>
    %86 = arith.addf %83, %85 : vector<4x1xf32>
    %87 = math.rsqrt %86 : vector<4x1xf32>
    %88 = arith.mulf %84, %87 : vector<4x1xf32>
    %89 = vector.broadcast %88 : vector<4x1xf32> to vector<4x1024xf32>
    %90 = arith.mulf %78, %89 : vector<4x1024xf32>
    %c0_30 = arith.constant 0 : index
    %c0_31 = arith.constant 0 : index
    %91 = vector.load %arg6[%c0_30, %c0_31] : memref<4x1xf32, #tpu.memory_space<vmem>>, vector<4x1xf32>
    %92 = vector.broadcast %91 : vector<4x1xf32> to vector<4x1024xf32>
    %93 = arith.addf %90, %92 : vector<4x1024xf32>
    %cst_32 = arith.constant 0.000000e+00 : f32
    %94 = vector.broadcast %cst_32 : f32 to vector<4x1024xf32>
    %95 = arith.maximumf %93, %94 : vector<4x1024xf32>
    %c3_i32_33 = arith.constant 3 : i32
    %96 = tpu.dynamic_rotate %95 by %c3_i32_33 dim 1 : vector<4x1024xf32>, i32 -> vector<4x1024xf32>
    %cst_34 = arith.constant 0.000000e+00 : f32
    %97 = vector.shape_cast %26 : vector<1x1024xi1> to vector<1x1024xi1>
    %98 = vector.broadcast %97 : vector<1x1024xi1> to vector<4x1024xi1>
    %99 = vector.broadcast %cst_34 : f32 to vector<4x1024xf32>
    %100 = arith.select %98, %96, %99 : vector<4x1024xi1>, vector<4x1024xf32>
    %c2_i32_35 = arith.constant 2 : i32
    %101 = tpu.dynamic_rotate %95 by %c2_i32_35 dim 1 : vector<4x1024xf32>, i32 -> vector<4x1024xf32>
    %cst_36 = arith.constant 0.000000e+00 : f32
    %102 = vector.shape_cast %28 : vector<1x1024xi1> to vector<1x1024xi1>
    %103 = vector.broadcast %102 : vector<1x1024xi1> to vector<4x1024xi1>
    %104 = vector.broadcast %cst_36 : f32 to vector<4x1024xf32>
    %105 = arith.select %103, %101, %104 : vector<4x1024xi1>, vector<4x1024xf32>
    %c1_i32_37 = arith.constant 1 : i32
    %106 = tpu.dynamic_rotate %95 by %c1_i32_37 dim 1 : vector<4x1024xf32>, i32 -> vector<4x1024xf32>
    %cst_38 = arith.constant 0.000000e+00 : f32
    %107 = vector.shape_cast %30 : vector<1x1024xi1> to vector<1x1024xi1>
    %108 = vector.broadcast %107 : vector<1x1024xi1> to vector<4x1024xi1>
    %109 = vector.broadcast %cst_38 : f32 to vector<4x1024xf32>
    %110 = arith.select %108, %106, %109 : vector<4x1024xi1>, vector<4x1024xf32>
    %c1023_i32_39 = arith.constant 1023 : i32
    %111 = tpu.dynamic_rotate %95 by %c1023_i32_39 dim 1 : vector<4x1024xf32>, i32 -> vector<4x1024xf32>
    %cst_40 = arith.constant 0.000000e+00 : f32
    %112 = vector.shape_cast %32 : vector<1x1024xi1> to vector<1x1024xi1>
    %113 = vector.broadcast %112 : vector<1x1024xi1> to vector<4x1024xi1>
    %114 = vector.broadcast %cst_40 : f32 to vector<4x1024xf32>
    %115 = arith.select %113, %111, %114 : vector<4x1024xi1>, vector<4x1024xf32>
    %c1022_i32_41 = arith.constant 1022 : i32
    %116 = tpu.dynamic_rotate %95 by %c1022_i32_41 dim 1 : vector<4x1024xf32>, i32 -> vector<4x1024xf32>
    %cst_42 = arith.constant 0.000000e+00 : f32
    %117 = vector.shape_cast %34 : vector<1x1024xi1> to vector<1x1024xi1>
    %118 = vector.broadcast %117 : vector<1x1024xi1> to vector<4x1024xi1>
    %119 = vector.broadcast %cst_42 : f32 to vector<4x1024xf32>
    %120 = arith.select %118, %116, %119 : vector<4x1024xi1>, vector<4x1024xf32>
    %c1021_i32_43 = arith.constant 1021 : i32
    %121 = tpu.dynamic_rotate %95 by %c1021_i32_43 dim 1 : vector<4x1024xf32>, i32 -> vector<4x1024xf32>
    %cst_44 = arith.constant 0.000000e+00 : f32
    %122 = vector.shape_cast %36 : vector<1x1024xi1> to vector<1x1024xi1>
    %123 = vector.broadcast %122 : vector<1x1024xi1> to vector<4x1024xi1>
    %124 = vector.broadcast %cst_44 : f32 to vector<4x1024xf32>
    %125 = arith.select %123, %121, %124 : vector<4x1024xi1>, vector<4x1024xf32>
    %126 = tpu.concatenate %100, %105, %110, %95, %115, %120, %125 in 0 : vector<4x1024xf32>, vector<4x1024xf32>, vector<4x1024xf32>, vector<4x1024xf32>, vector<4x1024xf32>, vector<4x1024xf32>, vector<4x1024xf32> -> vector<28x1024xf32>
    %c0_45 = arith.constant 0 : index
    %c0_46 = arith.constant 0 : index
    %127 = vector.load %arg7[%c0_45, %c0_46] : memref<4x28xf32, #tpu.memory_space<vmem>>, vector<4x28xf32>
    %cst_47 = arith.constant dense<0.000000e+00> : vector<4x1024xf32>
    %128 = tpu.matmul %127, %126, %cst_47 {dimension_numbers = #tpu.dot_dimension_numbers<[1], [0], [0], [1], [0, 0, 1, 1], [], []>} : vector<4x28xf32>, vector<28x1024xf32>, vector<4x1024xf32> -> vector<4x1024xf32>
    %c0_48 = arith.constant 0 : index
    %c0_49 = arith.constant 0 : index
    %129 = vector.load %arg8[%c0_48, %c0_49] : memref<4x1xf32, #tpu.memory_space<vmem>>, vector<4x1xf32>
    %130 = vector.broadcast %129 : vector<4x1xf32> to vector<4x1024xf32>
    %131 = arith.addf %128, %130 : vector<4x1024xf32>
    %cst_50 = arith.constant dense<0.000000e+00> : vector<4xf32>
    %132 = vector.multi_reduction <add>, %131, %cst_50 [1] : vector<4x1024xf32> to vector<4xf32>
    %133 = vector.shape_cast %132 : vector<4xf32> to vector<4x1xf32>
    %cst_51 = arith.constant 9.765625E-4 : f32
    %134 = vector.broadcast %cst_51 : f32 to vector<4x1xf32>
    %135 = arith.mulf %133, %134 : vector<4x1xf32>
    %136 = vector.broadcast %135 : vector<4x1xf32> to vector<4x1024xf32>
    %137 = arith.subf %131, %136 : vector<4x1024xf32>
    %138 = arith.mulf %137, %137 : vector<4x1024xf32>
    %cst_52 = arith.constant dense<0.000000e+00> : vector<4xf32>
    %139 = vector.multi_reduction <add>, %138, %cst_52 [1] : vector<4x1024xf32> to vector<4xf32>
    %140 = vector.shape_cast %139 : vector<4xf32> to vector<4x1xf32>
    %cst_53 = arith.constant 9.765625E-4 : f32
    %141 = vector.broadcast %cst_53 : f32 to vector<4x1xf32>
    %142 = arith.mulf %140, %141 : vector<4x1xf32>
    %c0_54 = arith.constant 0 : index
    %c0_55 = arith.constant 0 : index
    %143 = vector.load %arg9[%c0_54, %c0_55] : memref<4x1xf32, #tpu.memory_space<vmem>>, vector<4x1xf32>
    %cst_56 = arith.constant 9.99999974E-6 : f32
    %144 = vector.broadcast %cst_56 : f32 to vector<4x1xf32>
    %145 = arith.addf %142, %144 : vector<4x1xf32>
    %146 = math.rsqrt %145 : vector<4x1xf32>
    %147 = arith.mulf %143, %146 : vector<4x1xf32>
    %148 = vector.broadcast %147 : vector<4x1xf32> to vector<4x1024xf32>
    %149 = arith.mulf %137, %148 : vector<4x1024xf32>
    %c0_57 = arith.constant 0 : index
    %c0_58 = arith.constant 0 : index
    %150 = vector.load %arg10[%c0_57, %c0_58] : memref<4x1xf32, #tpu.memory_space<vmem>>, vector<4x1xf32>
    %151 = vector.broadcast %150 : vector<4x1xf32> to vector<4x1024xf32>
    %152 = arith.addf %149, %151 : vector<4x1024xf32>
    %cst_59 = arith.constant 0.000000e+00 : f32
    %153 = vector.broadcast %cst_59 : f32 to vector<4x1024xf32>
    %154 = arith.maximumf %152, %153 : vector<4x1024xf32>
    %c0_60 = arith.constant 0 : index
    %c0_61 = arith.constant 0 : index
    %155 = vector.load %arg11[%c0_60, %c0_61] : memref<4x1024xf32, #tpu.memory_space<vmem>>, vector<4x1024xf32>
    tpu.vector_store %arg11[%c0_60, %c0_61], %154 {strides = array<i32>} : memref<4x1024xf32, #tpu.memory_space<vmem>>, vector<4x1024xf32>,
    return
  }
}

</mosaic_0001>

<llo_original>
// kernel: tpu_custom_call.1
$region0: #{tpu_custom_call.1}
  #allocation0 [shape = 'u32[]', space=smem, size = 0x4, offset = 0x4, fixed_abs, tag = 'smem constant byte address 0x4 - core index']
  #allocation1 [shape = 'u32[72,128]{1,0:T(1,128)}', space=vmem, size = 0x9000, scoped, tag = 'internal scratch']
  %s0 = inlined_call_operand.hbm [shape: f32[8,256], index: 0, kind: input, shape index: {}]
  %s1 = inlined_call_operand.hbm [shape: f32[8,512], index: 1, kind: input, shape index: {}]
  %s2 = inlined_call_operand.hbm [shape: f32[256,512], index: 2, kind: input, shape index: {}]
  %s3 = inlined_call_operand.vmem [shape: f32[4,28], index: 3, kind: input, shape index: {}]
  %s4 = inlined_call_operand.vmem [shape: f32[4,1], index: 4, kind: input, shape index: {}]
  %s5 = inlined_call_operand.vmem [shape: f32[4,1], index: 5, kind: input, shape index: {}]
  %s6 = inlined_call_operand.vmem [shape: f32[4,1], index: 6, kind: input, shape index: {}]
  %s7 = inlined_call_operand.vmem [shape: f32[4,28], index: 7, kind: input, shape index: {}]
  %s8 = inlined_call_operand.vmem [shape: f32[4,1], index: 8, kind: input, shape index: {}]
  %s9 = inlined_call_operand.vmem [shape: f32[4,1], index: 9, kind: input, shape index: {}]
  %s10 = inlined_call_operand.vmem [shape: f32[4,1], index: 10, kind: input, shape index: {}]
  %s11 = inlined_call_operand.hbm [shape: f32[4,1024], index: 11, kind: output, shape index: {}]
  %s12 = sld [smem:[#allocation0]]
  $region66: #{tpu_custom_call.1} parent=0
    _
  %s14 = ssub.s32 1, %s12
  %s15 = scalar_select 0, %s14, %s12
  $region1: #{tpu_custom_call.1} parent=0
    #allocation2 [shape = 'u8[8192]{0}', space=vmem, size = 0x2000, scoped, tag = 'input window, operand 0, single buffered']
    #allocation3 [shape = 's32[1]{0}', space=sflag, size = 0x4, scoped, tag = 'scoped memory for tpu_custom_call.1']
    #allocation4 [shape = 's32[1]{0}', space=sflag, size = 0x4, scoped, tag = 'scoped memory for tpu_custom_call.1']
    #allocation5 [shape = 'u8[16384]{0}', space=vmem, size = 0x4000, scoped, tag = 'input window, operand 1, single buffered']
    #allocation6 [shape = 's32[1]{0}', space=sflag, size = 0x4, scoped, tag = 'scoped memory for tpu_custom_call.1']
    #allocation7 [shape = 'u8[524288]{0}', space=vmem, size = 0x80000, scoped, tag = 'input window, operand 2, single buffered']
    #allocation8 [shape = 'u8[16384]{0}', space=vmem, size = 0x4000, scoped, tag = 'output window, operand 0, single buffered']
    %16 = vsyncpa [#allocation3], 0
    %17 = vsyncpa [#allocation6], 0
    %18 = vsyncpa [#allocation4], 0
    // Predicated region
    $region2: #{tpu_custom_call.1} parent=1 // pred_check
      _
    $region3: #{tpu_custom_call.1} parent=1 // pred_check_branch
      %20 = sbr.rel (0) target = $region5
    $region4: #{tpu_custom_call.1} parent=1 // pred_region
      %22 = vsyncadd [#allocation3], 0
      %s24 = sshll.u32 %s0, 4
      %s25 = int_to_ptr.hbm [resolvable:$true] %s24
      %s26 = sshll.u32 [#allocation2], 4
      %s27 = int_to_ptr.vmem [resolvable:$true] %s26
      %29 = dma.hbm_to_vmem [thread:$0]  %s25, 256, %s27, [#allocation3]
    $region5: #{tpu_custom_call.1} parent=1 // pred_fallthru
      _
    // Predicated region
    $region6: #{tpu_custom_call.1} parent=1 // pred_check
      _
    $region7: #{tpu_custom_call.1} parent=1 // pred_check_branch
      %31 = sbr.rel (0) target = $region9
    $region8: #{tpu_custom_call.1} parent=1 // pred_region
      %33 = vsyncadd [#allocation6], 0
      %s35 = sshll.u32 %s1, 4
      %s36 = int_to_ptr.hbm [resolvable:$true] %s35
      %s37 = sshll.u32 [#allocation5], 4
      %s38 = int_to_ptr.vmem [resolvable:$true] %s37
      %40 = dma.hbm_to_vmem [thread:$0]  %s36, 512, %s38, [#allocation6]
    $region9: #{tpu_custom_call.1} parent=1 // pred_fallthru
      _
    // Predicated region
    $region10: #{tpu_custom_call.1} parent=1 // pred_check
      _
    $region11: #{tpu_custom_call.1} parent=1 // pred_check_branch
      %42 = sbr.rel (0) target = $region13
    $region12: #{tpu_custom_call.1} parent=1 // pred_region
      %44 = vsyncadd [#allocation6], 0
      %s45 = sshll.u32 %s2, 4
      %s46 = int_to_ptr.hbm [resolvable:$true] %s45
      %s47 = sshll.u32 [#allocation7], 4
      %s48 = int_to_ptr.vmem [resolvable:$true] %s47
      %53 = dma.hbm_to_vmem [thread:$0]  %s46, 16384, %s48, [#allocation6], 512, 512, 32
    $region13: #{tpu_custom_call.1} parent=1 // pred_fallthru
      _
    // Predicated region
    $region14: #{tpu_custom_call.1} parent=1 // pred_check
      _
    $region15: #{tpu_custom_call.1} parent=1 // pred_check_branch
      %55 = sbr.rel (0) target = $region17
    $region16: #{tpu_custom_call.1} parent=1 // pred_region
      _
    $region17: #{tpu_custom_call.1} parent=1 // pred_fallthru
      _
    // Predicated region
    $region18: #{tpu_custom_call.1} parent=1 // pred_check
      _
    $region19: #{tpu_custom_call.1} parent=1 // pred_check_branch
      %57 = sbr.rel (0) target = $region21
    $region20: #{tpu_custom_call.1} parent=1 // pred_region
      _
    $region21: #{tpu_custom_call.1} parent=1 // pred_fallthru
      _
    // Predicated region
    $region22: #{tpu_custom_call.1} parent=1 // pred_check
      _
    $region23: #{tpu_custom_call.1} parent=1 // pred_check_branch
      %59 = sbr.rel (0) target = $region25
    $region24: #{tpu_custom_call.1} parent=1 // pred_region
      _
    $region25: #{tpu_custom_call.1} parent=1 // pred_fallthru
      _
    // Predicated region
    $region26: #{tpu_custom_call.1} parent=1 // pred_check
      _
    $region27: #{tpu_custom_call.1} parent=1 // pred_check_branch
      %61 = sbr.rel (0) target = $region29
    $region28: #{tpu_custom_call.1} parent=1 // pred_region
      _
    $region29: #{tpu_custom_call.1} parent=1 // pred_fallthru
      _
    // Predicated region
    $region30: #{tpu_custom_call.1} parent=1 // pred_check
      _
    $region31: #{tpu_custom_call.1} parent=1 // pred_check_branch
      %63 = sbr.rel (0) target = $region33
    $region32: #{tpu_custom_call.1} parent=1 // pred_region
      _
    $region33: #{tpu_custom_call.1} parent=1 // pred_fallthru
      _
    // Predicated region
    $region34: #{tpu_custom_call.1} parent=1 // pred_check
      _
    $region35: #{tpu_custom_call.1} parent=1 // pred_check_branch
      %65 = sbr.rel (0) target = $region37
    $region36: #{tpu_custom_call.1} parent=1 // pred_region
      _
    $region37: #{tpu_custom_call.1} parent=1 // pred_fallthru
      _
    // Predicated region
    $region38: #{tpu_custom_call.1} parent=1 // pred_check
      _
    $region39: #{tpu_custom_call.1} parent=1 // pred_check_branch
      %67 = sbr.rel (0) target = $region41
    $region40: #{tpu_custom_call.1} parent=1 // pred_region
      _
    $region41: #{tpu_custom_call.1} parent=1 // pred_fallthru
      _
    // Predicated region
    $region42: #{tpu_custom_call.1} parent=1 // pred_check
      _
    $region43: #{tpu_custom_call.1} parent=1 // pred_check_branch
      %69 = sbr.rel (0) target = $region45
    $region44: #{tpu_custom_call.1} parent=1 // pred_region
      _
    $region45: #{tpu_custom_call.1} parent=1 // pred_fallthru
      _
    // Predicated region
    $region46: #{tpu_custom_call.1} parent=1 // pred_check
      _
    $region47: #{tpu_custom_call.1} parent=1 // pred_check_branch
      %71 = sbr.rel (0) target = $region49
    $region48: #{tpu_custom_call.1} parent=1 // pred_region
      %73 = dma.done [#allocation3], 256
    $region49: #{tpu_custom_call.1} parent=1 // pred_fallthru
      _
    // Predicated region
    $region50: #{tpu_custom_call.1} parent=1 // pred_check
      _
    $region51: #{tpu_custom_call.1} parent=1 // pred_check_branch
      %75 = sbr.rel (0) target = $region53
    $region52: #{tpu_custom_call.1} parent=1 // pred_region
      %77 = dma.done [#allocation6], 512
    $region53: #{tpu_custom_call.1} parent=1 // pred_fallthru
      _
    // Predicated region
    $region54: #{tpu_custom_call.1} parent=1 // pred_check
      _
    $region55: #{tpu_custom_call.1} parent=1 // pred_check_branch
      %79 = sbr.rel (0) target = $region57
    $region56: #{tpu_custom_call.1} parent=1 // pred_region
      %81 = dma.done [#allocation6], 16384
    $region57: #{tpu_custom_call.1} parent=1 // pred_fallthru
      _
    %v82 = vld [vmem:[#allocation2] sm:$0xff]
    %v83 = vld [vmem:[#allocation2 + $0x8] sm:$0xff]
    %v84 = vld [vmem:[#allocation7] sm:$0xff]
    %v85 = vld [vmem:[#allocation7 + $0x8] sm:$0xff]
    %v86 = vld [vmem:[#allocation7 + $0x10] sm:$0xff]
    %v87 = vld [vmem:[#allocation7 + $0x18] sm:$0xff]
    %v88 = vld [vmem:[#allocation7 + $0x20] sm:$0xff]
    %v89 = vld [vmem:[#allocation7 + $0x28] sm:$0xff]
    %v90 = vld [vmem:[#allocation7 + $0x30] sm:$0xff]
    %v91 = vld [vmem:[#allocation7 + $0x38] sm:$0xff]
    %v92 = vld [vmem:[#allocation7 + $0x40] sm:$0xff]
    %v93 = vld [vmem:[#allocation7 + $0x48] sm:$0xff]
    %v94 = vld [vmem:[#allocation7 + $0x50] sm:$0xff]
    %v95 = vld [vmem:[#allocation7 + $0x58] sm:$0xff]
    %v96 = vld [vmem:[#allocation7 + $0x60] sm:$0xff]
    %v97 = vld [vmem:[#allocation7 + $0x68] sm:$0xff]
    %v98 = vld [vmem:[#allocation7 + $0x70] sm:$0xff]
    %v99 = vld [vmem:[#allocation7 + $0x78] sm:$0xff]
    %v100 = vld [vmem:[#allocation7 + $0x80] sm:$0xff]
    %v101 = vld [vmem:[#allocation7 + $0x88] sm:$0xff]
    %v102 = vld [vmem:[#allocation7 + $0x90] sm:$0xff]
    %v103 = vld [vmem:[#allocation7 + $0x98] sm:$0xff]
    %v104 = vld [vmem:[#allocation7 + $0xa0] sm:$0xff]
    %v105 = vld [vmem:[#allocation7 + $0xa8] sm:$0xff]
    %v106 = vld [vmem:[#allocation7 + $0xb0] sm:$0xff]
    %v107 = vld [vmem:[#allocation7 + $0xb8] sm:$0xff]
    %v108 = vld [vmem:[#allocation7 + $0xc0] sm:$0xff]
    %v109 = vld [vmem:[#allocation7 + $0xc8] sm:$0xff]
    %v110 = vld [vmem:[#allocation7 + $0xd0] sm:$0xff]
    %v111 = vld [vmem:[#allocation7 + $0xd8] sm:$0xff]
    %v112 = vld [vmem:[#allocation7 + $0xe0] sm:$0xff]
    %v113 = vld [vmem:[#allocation7 + $0xe8] sm:$0xff]
    %v114 = vld [vmem:[#allocation7 + $0xf0] sm:$0xff]
    %v115 = vld [vmem:[#allocation7 + $0xf8] sm:$0xff]
    %v116 = vld [vmem:[#allocation7 + $0x100] sm:$0xff]
    %v117 = vld [vmem:[#allocation7 + $0x108] sm:$0xff]
    %v118 = vld [vmem:[#allocation7 + $0x110] sm:$0xff]
    %v119 = vld [vmem:[#allocation7 + $0x118] sm:$0xff]
    %v120 = vld [vmem:[#allocation7 + $0x120] sm:$0xff]
    %v121 = vld [vmem:[#allocation7 + $0x128] sm:$0xff]
    %v122 = vld [vmem:[#allocation7 + $0x130] sm:$0xff]
    %v123 = vld [vmem:[#allocation7 + $0x138] sm:$0xff]
    %v124 = vld [vmem:[#allocation7 + $0x140] sm:$0xff]
    %v125 = vld [vmem:[#allocation7 + $0x148] sm:$0xff]
    %v126 = vld [vmem:[#allocation7 + $0x150] sm:$0xff]
    %v127 = vld [vmem:[#allocation7 + $0x158] sm:$0xff]
    %v128 = vld [vmem:[#allocation7 + $0x160] sm:$0xff]
    %v129 = vld [vmem:[#allocation7 + $0x168] sm:$0xff]
    %v130 = vld [vmem:[#allocation7 + $0x170] sm:$0xff]
    %v131 = vld [vmem:[#allocation7 + $0x178] sm:$0xff]
    %v132 = vld [vmem:[#allocation7 + $0x180] sm:$0xff]
    %v133 = vld [vmem:[#allocation7 + $0x188] sm:$0xff]
    %v134 = vld [vmem:[#allocation7 + $0x190] sm:$0xff]
    %v135 = vld [vmem:[#allocation7 + $0x198] sm:$0xff]
    %v136 = vld [vmem:[#allocation7 + $0x1a0] sm:$0xff]
    %v137 = vld [vmem:[#allocation7 + $0x1a8] sm:$0xff]
    %v138 = vld [vmem:[#allocation7 + $0x1b0] sm:$0xff]
    %v139 = vld [vmem:[#allocation7 + $0x1b8] sm:$0xff]
    %v140 = vld [vmem:[#allocation7 + $0x1c0] sm:$0xff]
    %v141 = vld [vmem:[#allocation7 + $0x1c8] sm:$0xff]
    %v142 = vld [vmem:[#allocation7 + $0x1d0] sm:$0xff]
    %v143 = vld [vmem:[#allocation7 + $0x1d8] sm:$0xff]
    %v144 = vld [vmem:[#allocation7 + $0x1e0] sm:$0xff]
    %v145 = vld [vmem:[#allocation7 + $0x1e8] sm:$0xff]
    %v146 = vld [vmem:[#allocation7 + $0x1f0] sm:$0xff]
    %v147 = vld [vmem:[#allocation7 + $0x1f8] sm:$0xff]
    %v148 = vld [vmem:[#allocation7 + $0x200] sm:$0xff]
    %v149 = vld [vmem:[#allocation7 + $0x208] sm:$0xff]
    %v150 = vld [vmem:[#allocation7 + $0x210] sm:$0xff]
    %v151 = vld [vmem:[#allocation7 + $0x218] sm:$0xff]
    %v152 = vld [vmem:[#allocation7 + $0x220] sm:$0xff]
    %v153 = vld [vmem:[#allocation7 + $0x228] sm:$0xff]
    %v154 = vld [vmem:[#allocation7 + $0x230] sm:$0xff]
    %v155 = vld [vmem:[#allocation7 + $0x238] sm:$0xff]
    %v156 = vld [vmem:[#allocation7 + $0x240] sm:$0xff]
    %v157 = vld [vmem:[#allocation7 + $0x248] sm:$0xff]
    %v158 = vld [vmem:[#allocation7 + $0x250] sm:$0xff]
    %v159 = vld [vmem:[#allocation7 + $0x258] sm:$0xff]
    %v160 = vld [vmem:[#allocation7 + $0x260] sm:$0xff]
    %v161 = vld [vmem:[#allocation7 + $0x268] sm:$0xff]
    %v162 = vld [vmem:[#allocation7 + $0x270] sm:$0xff]
    %v163 = vld [vmem:[#allocation7 + $0x278] sm:$0xff]
    %v164 = vld [vmem:[#allocation7 + $0x280] sm:$0xff]
    %v165 = vld [vmem:[#allocation7 + $0x288] sm:$0xff]
    %v166 = vld [vmem:[#allocation7 + $0x290] sm:$0xff]
    %v167 = vld [vmem:[#allocation7 + $0x298] sm:$0xff]
    %v168 = vld [vmem:[#allocation7 + $0x2a0] sm:$0xff]
    %v169 = vld [vmem:[#allocation7 + $0x2a8] sm:$0xff]
    %v170 = vld [vmem:[#allocation7 + $0x2b0] sm:$0xff]
    %v171 = vld [vmem:[#allocation7 + $0x2b8] sm:$0xff]
    %v172 = vld [vmem:[#allocation7 + $0x2c0] sm:$0xff]
    %v173 = vld [vmem:[#allocation7 + $0x2c8] sm:$0xff]
    %v174 = vld [vmem:[#allocation7 + $0x2d0] sm:$0xff]
    %v175 = vld [vmem:[#allocation7 + $0x2d8] sm:$0xff]
    %v176 = vld [vmem:[#allocation7 + $0x2e0] sm:$0xff]
    %v177 = vld [vmem:[#allocation7 + $0x2e8] sm:$0xff]
    %v178 = vld [vmem:[#allocation7 + $0x2f0] sm:$0xff]
    %v179 = vld [vmem:[#allocation7 + $0x2f8] sm:$0xff]
    %v180 = vld [vmem:[#allocation7 + $0x300] sm:$0xff]
    %v181 = vld [vmem:[#allocation7 + $0x308] sm:$0xff]
    %v182 = vld [vmem:[#allocation7 + $0x310] sm:$0xff]
    %v183 = vld [vmem:[#allocation7 + $0x318] sm:$0xff]
    %v184 = vld [vmem:[#allocation7 + $0x320] sm:$0xff]
    %v185 = vld [vmem:[#allocation7 + $0x328] sm:$0xff]
    %v186 = vld [vmem:[#allocation7 + $0x330] sm:$0xff]
    %v187 = vld [vmem:[#allocation7 + $0x338] sm:$0xff]
    %v188 = vld [vmem:[#allocation7 + $0x340] sm:$0xff]
    %v189 = vld [vmem:[#allocation7 + $0x348] sm:$0xff]
    %v190 = vld [vmem:[#allocation7 + $0x350] sm:$0xff]
    %v191 = vld [vmem:[#allocation7 + $0x358] sm:$0xff]
    %v192 = vld [vmem:[#allocation7 + $0x360] sm:$0xff]
    %v193 = vld [vmem:[#allocation7 + $0x368] sm:$0xff]
    %v194 = vld [vmem:[#allocation7 + $0x370] sm:$0xff]
    %v195 = vld [vmem:[#allocation7 + $0x378] sm:$0xff]
    %v196 = vld [vmem:[#allocation7 + $0x380] sm:$0xff]
    %v197 = vld [vmem:[#allocation7 + $0x388] sm:$0xff]
    %v198 = vld [vmem:[#allocation7 + $0x390] sm:$0xff]
    %v199 = vld [vmem:[#allocation7 + $0x398] sm:$0xff]
    %v200 = vld [vmem:[#allocation7 + $0x3a0] sm:$0xff]
    %v201 = vld [vmem:[#allocation7 + $0x3a8] sm:$0xff]
    %v202 = vld [vmem:[#allocation7 + $0x3b0] sm:$0xff]
    %v203 = vld [vmem:[#allocation7 + $0x3b8] sm:$0xff]
    %v204 = vld [vmem:[#allocation7 + $0x3c0] sm:$0xff]
    %v205 = vld [vmem:[#allocation7 + $0x3c8] sm:$0xff]
    %v206 = vld [vmem:[#allocation7 + $0x3d0] sm:$0xff]
    %v207 = vld [vmem:[#allocation7 + $0x3d8] sm:$0xff]
    %v208 = vld [vmem:[#allocation7 + $0x3e0] sm:$0xff]
    %v209 = vld [vmem:[#allocation7 + $0x3e8] sm:$0xff]
    %v210 = vld [vmem:[#allocation7 + $0x3f0] sm:$0xff]
    %v211 = vld [vmem:[#allocation7 + $0x3f8] sm:$0xff]
    %v212 = vld [vmem:[#allocation5] sm:$0xff]
    %v213 = vld [vmem:[#allocation5 + $0x8] sm:$0xff]
    %v214 = vld [vmem:[#allocation5 + $0x10] sm:$0xff]
    %v215 = vld [vmem:[#allocation5 + $0x18] sm:$0xff]
    %216 = vmatpush.msra.mxu0 %v144
    %217 = vmatpush.msra.mxu0 %v140
    %218 = vmatpush.msra.mxu0 %v136
    %219 = vmatpush.msra.mxu0 %v132
    %220 = vmatpush.msra.mxu0 %v128
    %221 = vmatpush.msra.mxu0 %v124
    %222 = vmatpush.msra.mxu0 %v120
    %223 = vmatpush.msra.mxu0 %v116
    %224 = vmatpush.msra.mxu0 %v112
    %225 = vmatpush.msra.mxu0 %v108
    %226 = vmatpush.msra.mxu0 %v104
    %227 = vmatpush.msra.mxu0 %v100
    %228 = vmatpush.msra.mxu0 %v96
    %229 = vmatpush.msra.mxu0 %v92
    %230 = vmatpush.msra.mxu0 %v88
    %231 = vmatpush.msra.mxu0 %v84
    %232 = vmatmul.f32.gmra.mxu0 %v82
    %v233 = vpop.f32.mrf.mxu0
    %v234 = vadd.f32 %v212, %v233
    %235 = vdwg.mxu0
    %236 = vmatpush.msra.mxu0 %v208
    %237 = vmatpush.msra.mxu0 %v204
    %238 = vmatpush.msra.mxu0 %v200
    %239 = vmatpush.msra.mxu0 %v196
    %240 = vmatpush.msra.mxu0 %v192
    %241 = vmatpush.msra.mxu0 %v188
    %242 = vmatpush.msra.mxu0 %v184
    %243 = vmatpush.msra.mxu0 %v180
    %244 = vmatpush.msra.mxu0 %v176
    %245 = vmatpush.msra.mxu0 %v172
    %246 = vmatpush.msra.mxu0 %v168
    %247 = vmatpush.msra.mxu0 %v164
    %248 = vmatpush.msra.mxu0 %v160
    %249 = vmatpush.msra.mxu0 %v156
    %250 = vmatpush.msra.mxu0 %v152
    %251 = vmatpush.msra.mxu0 %v148
    %252 = vmatmul.f32.gmra.mxu0 %v83
    %v253 = vpop.f32.mrf.mxu0
    %v254 = vadd.f32 %v234, %v253
    %255 = vdwg.mxu0
    %256 = vmatpush.msra.mxu0 %v145
    %257 = vmatpush.msra.mxu0 %v141
    %258 = vmatpush.msra.mxu0 %v137
    %259 = vmatpush.msra.mxu0 %v133
    %260 = vmatpush.msra.mxu0 %v129
    %261 = vmatpush.msra.mxu0 %v125
    %262 = vmatpush.msra.mxu0 %v121
    %263 = vmatpush.msra.mxu0 %v117
    %264 = vmatpush.msra.mxu0 %v113
    %265 = vmatpush.msra.mxu0 %v109
    %266 = vmatpush.msra.mxu0 %v105
    %267 = vmatpush.msra.mxu0 %v101
    %268 = vmatpush.msra.mxu0 %v97
    %269 = vmatpush.msra.mxu0 %v93
    %270 = vmatpush.msra.mxu0 %v89
    %271 = vmatpush.msra.mxu0 %v85
    %272 = vmatmul.f32.gmra.mxu0 %v82
    %v273 = vpop.f32.mrf.mxu0
    %v274 = vadd.f32 %v213, %v273
    %275 = vdwg.mxu0
    %276 = vmatpush.msra.mxu0 %v209
    %277 = vmatpush.msra.mxu0 %v205
    %278 = vmatpush.msra.mxu0 %v201
    %279 = vmatpush.msra.mxu0 %v197
    %280 = vmatpush.msra.mxu0 %v193
    %281 = vmatpush.msra.mxu0 %v189
    %282 = vmatpush.msra.mxu0 %v185
    %283 = vmatpush.msra.mxu0 %v181
    %284 = vmatpush.msra.mxu0 %v177
    %285 = vmatpush.msra.mxu0 %v173
    %286 = vmatpush.msra.mxu0 %v169
    %287 = vmatpush.msra.mxu0 %v165
    %288 = vmatpush.msra.mxu0 %v161
    %289 = vmatpush.msra.mxu0 %v157
    %290 = vmatpush.msra.mxu0 %v153
    %291 = vmatpush.msra.mxu0 %v149
    %292 = vmatmul.f32.gmra.mxu0 %v83
    %v293 = vpop.f32.mrf.mxu0
    %v294 = vadd.f32 %v274, %v293
    %295 = vdwg.mxu0
    %296 = vmatpush.msra.mxu0 %v146
    %297 = vmatpush.msra.mxu0 %v142
    %298 = vmatpush.msra.mxu0 %v138
    %299 = vmatpush.msra.mxu0 %v134
    %300 = vmatpush.msra.mxu0 %v130
    %301 = vmatpush.msra.mxu0 %v126
    %302 = vmatpush.msra.mxu0 %v122
    %303 = vmatpush.msra.mxu0 %v118
    %304 = vmatpush.msra.mxu0 %v114
    %305 = vmatpush.msra.mxu0 %v110
    %306 = vmatpush.msra.mxu0 %v106
    %307 = vmatpush.msra.mxu0 %v102
    %308 = vmatpush.msra.mxu0 %v98
    %309 = vmatpush.msra.mxu0 %v94
    %310 = vmatpush.msra.mxu0 %v90
    %311 = vmatpush.msra.mxu0 %v86
    %312 = vmatmul.f32.gmra.mxu0 %v82
    %v313 = vpop.f32.mrf.mxu0
    %v314 = vadd.f32 %v214, %v313
    %315 = vdwg.mxu0
    %316 = vmatpush.msra.mxu0 %v210
    %317 = vmatpush.msra.mxu0 %v206
    %318 = vmatpush.msra.mxu0 %v202
    %319 = vmatpush.msra.mxu0 %v198
    %320 = vmatpush.msra.mxu0 %v194
    %321 = vmatpush.msra.mxu0 %v190
    %322 = vmatpush.msra.mxu0 %v186
    %323 = vmatpush.msra.mxu0 %v182
    %324 = vmatpush.msra.mxu0 %v178
    %325 = vmatpush.msra.mxu0 %v174
    %326 = vmatpush.msra.mxu0 %v170
    %327 = vmatpush.msra.mxu0 %v166
    %328 = vmatpush.msra.mxu0 %v162
    %329 = vmatpush.msra.mxu0 %v158
    %330 = vmatpush.msra.mxu0 %v154
    %331 = vmatpush.msra.mxu0 %v150
    %332 = vmatmul.f32.gmra.mxu0 %v83
    %v333 = vpop.f32.mrf.mxu0
    %v334 = vadd.f32 %v314, %v333
    %335 = vdwg.mxu0
    %336 = vmatpush.msra.mxu0 %v147
    %337 = vmatpush.msra.mxu0 %v143
    %338 = vmatpush.msra.mxu0 %v139
    %339 = vmatpush.msra.mxu0 %v135
    %340 = vmatpush.msra.mxu0 %v131
    %341 = vmatpush.msra.mxu0 %v127
    %342 = vmatpush.msra.mxu0 %v123
    %343 = vmatpush.msra.mxu0 %v119
    %344 = vmatpush.msra.mxu0 %v115
    %345 = vmatpush.msra.mxu0 %v111
    %346 = vmatpush.msra.mxu0 %v107
    %347 = vmatpush.msra.mxu0 %v103
    %348 = vmatpush.msra.mxu0 %v99
    %349 = vmatpush.msra.mxu0 %v95
    %350 = vmatpush.msra.mxu0 %v91
    %351 = vmatpush.msra.mxu0 %v87
    %352 = vmatmul.f32.gmra.mxu0 %v82
    %v353 = vpop.f32.mrf.mxu0
    %v354 = vadd.f32 %v215, %v353
    %355 = vdwg.mxu0
    %356 = vmatpush.msra.mxu0 %v211
    %357 = vmatpush.msra.mxu0 %v207
    %358 = vmatpush.msra.mxu0 %v203
    %359 = vmatpush.msra.mxu0 %v199
    %360 = vmatpush.msra.mxu0 %v195
    %361 = vmatpush.msra.mxu0 %v191
    %362 = vmatpush.msra.mxu0 %v187
    %363 = vmatpush.msra.mxu0 %v183
    %364 = vmatpush.msra.mxu0 %v179
    %365 = vmatpush.msra.mxu0 %v175
    %366 = vmatpush.msra.mxu0 %v171
    %367 = vmatpush.msra.mxu0 %v167
    %368 = vmatpush.msra.mxu0 %v163
    %369 = vmatpush.msra.mxu0 %v159
    %370 = vmatpush.msra.mxu0 %v155
    %371 = vmatpush.msra.mxu0 %v151
    %372 = vmatmul.f32.gmra.mxu0 %v83
    %v373 = vpop.f32.mrf.mxu0
    %v374 = vadd.f32 %v354, %v373
    %375 = vdwg.mxu0
    %v380 = vrot.slane %v254, 4
    %v381 = vrot.slane %v294, 4
    %v382 = vrot.slane %v334, 4
    %v383 = vrot.slane %v374, 4
    %v388 = vlaneseq
    %v389 = vand.u32 %v388, 127
    %v390 = vadd.s32 %v389, 128
    %v391 = vadd.s32 %v389, 256
    %v392 = vadd.s32 %v389, 384
    %v393 = vadd.s32 %v389, 512
    %v394 = vadd.s32 %v389, 640
    %v395 = vadd.s32 %v389, 768
    %v396 = vadd.s32 %v389, 896
    %vm397 = vcmp.lt.s32.totalorder %v389, 0
    %v398 = vsub.s32 0, %v389
    %v399 = vsel %vm397, %v398, %v389
    %v400 = vshrl.u32 %v399, 9
    %v401 = vand.u32 %v399, 511
    %v402 = vsub.s32 0, %v401
    %v403 = vsel %vm397, %v402, %v401
    %vm404 = vcmp.lt.s32.totalorder %v390, 0
    %v405 = vsub.s32 0, %v390
    %v406 = vsel %vm404, %v405, %v390
    %v407 = vshrl.u32 %v406, 9
    %v408 = vand.u32 %v406, 511
    %v409 = vsub.s32 0, %v408
    %v410 = vsel %vm404, %v409, %v408
    %vm411 = vcmp.lt.s32.totalorder %v391, 0
    %v412 = vsub.s32 0, %v391
    %v413 = vsel %vm411, %v412, %v391
    %v414 = vshrl.u32 %v413, 9
    %v415 = vand.u32 %v413, 511
    %v416 = vsub.s32 0, %v415
    %v417 = vsel %vm411, %v416, %v415
    %vm418 = vcmp.lt.s32.totalorder %v392, 0
    %v419 = vsub.s32 0, %v392
    %v420 = vsel %vm418, %v419, %v392
    %v421 = vshrl.u32 %v420, 9
    %v422 = vand.u32 %v420, 511
    %v423 = vsub.s32 0, %v422
    %v424 = vsel %vm418, %v423, %v422
    %vm425 = vcmp.lt.s32.totalorder %v393, 0
    %v426 = vsub.s32 0, %v393
    %v427 = vsel %vm425, %v426, %v393
    %v428 = vshrl.u32 %v427, 9
    %v429 = vand.u32 %v427, 511
    %v430 = vsub.s32 0, %v429
    %v431 = vsel %vm425, %v430, %v429
    %vm432 = vcmp.lt.s32.totalorder %v394, 0
    %v433 = vsub.s32 0, %v394
    %v434 = vsel %vm432, %v433, %v394
    %v435 = vshrl.u32 %v434, 9
    %v436 = vand.u32 %v434, 511
    %v437 = vsub.s32 0, %v436
    %v438 = vsel %vm432, %v437, %v436
    %vm439 = vcmp.lt.s32.totalorder %v395, 0
    %v440 = vsub.s32 0, %v395
    %v441 = vsel %vm439, %v440, %v395
    %v442 = vshrl.u32 %v441, 9
    %v443 = vand.u32 %v441, 511
    %v444 = vsub.s32 0, %v443
    %v445 = vsel %vm439, %v444, %v443
    %vm446 = vcmp.lt.s32.totalorder %v396, 0
    %v447 = vsub.s32 0, %v396
    %v448 = vsel %vm446, %v447, %v396
    %v449 = vshrl.u32 %v448, 9
    %v450 = vand.u32 %v448, 511
    %v451 = vsub.s32 0, %v450
    %v452 = vsel %vm446, %v451, %v450
    %vm453 = vcmp.ne.s32.totalorder %v403, 0
    %vm454 = vcmp.ne.s32.totalorder %v410, 0
    %vm455 = vcmp.ne.s32.totalorder %v417, 0
    %vm456 = vcmp.ne.s32.totalorder %v424, 0
    %vm457 = vcmp.ne.s32.totalorder %v431, 0
    %vm458 = vcmp.ne.s32.totalorder %v438, 0
    %vm459 = vcmp.ne.s32.totalorder %v445, 0
    %vm460 = vcmp.ne.s32.totalorder %v452, 0
    %vm461 = vcmp.lt.s32.totalorder %v403, 0
    %vm462 = vcmp.lt.s32.totalorder %v410, 0
    %vm463 = vcmp.lt.s32.totalorder %v417, 0
    %vm464 = vcmp.lt.s32.totalorder %v424, 0
    %vm465 = vcmp.lt.s32.totalorder %v431, 0
    %vm466 = vcmp.lt.s32.totalorder %v438, 0
    %vm467 = vcmp.lt.s32.totalorder %v445, 0
    %vm468 = vcmp.lt.s32.totalorder %v452, 0
    %vm469 = vmand %vm461, %vm453
    %vm470 = vmand %vm462, %vm454
    %vm471 = vmand %vm463, %vm455
    %vm472 = vmand %vm464, %vm456
    %vm473 = vmand %vm465, %vm457
    %vm474 = vmand %vm466, %vm458
    %vm475 = vmand %vm467, %vm459
    %vm476 = vmand %vm468, %vm460
    %v477 = vadd.s32 %v403, 512
    %v478 = vadd.s32 %v410, 512
    %v479 = vadd.s32 %v417, 512
    %v480 = vadd.s32 %v424, 512
    %v481 = vadd.s32 %v431, 512
    %v482 = vadd.s32 %v438, 512
    %v483 = vadd.s32 %v445, 512
    %v484 = vadd.s32 %v452, 512
    %v485 = vsel %vm469, %v477, %v403
    %v486 = vsel %vm470, %v478, %v410
    %v487 = vsel %vm471, %v479, %v417
    %v488 = vsel %vm472, %v480, %v424
    %v489 = vsel %vm473, %v481, %v431
    %v490 = vsel %vm474, %v482, %v438
    %v491 = vsel %vm475, %v483, %v445
    %v492 = vsel %vm476, %v484, %v452
    %vm493 = vcmp.ge.s32.totalorder %v485, 3
    %vm494 = vcmp.ge.s32.totalorder %v486, 3
    %vm495 = vcmp.ge.s32.totalorder %v487, 3
    %vm496 = vcmp.ge.s32.totalorder %v488, 3
    %vm497 = vcmp.ge.s32.totalorder %v489, 3
    %vm498 = vcmp.ge.s32.totalorder %v490, 3
    %vm499 = vcmp.ge.s32.totalorder %v491, 3
    %vm500 = vcmp.ge.s32.totalorder %v492, 3
    %vm501 = vcmp.ge.s32.totalorder %v485, 2
    %vm502 = vcmp.ge.s32.totalorder %v486, 2
    %vm503 = vcmp.ge.s32.totalorder %v487, 2
    %vm504 = vcmp.ge.s32.totalorder %v488, 2
    %vm505 = vcmp.ge.s32.totalorder %v489, 2
    %vm506 = vcmp.ge.s32.totalorder %v490, 2
    %vm507 = vcmp.ge.s32.totalorder %v491, 2
    %vm508 = vcmp.ge.s32.totalorder %v492, 2
    %vm509 = vcmp.ge.s32.totalorder %v485, 1
    %vm510 = vcmp.ge.s32.totalorder %v486, 1
    %vm511 = vcmp.ge.s32.totalorder %v487, 1
    %vm512 = vcmp.ge.s32.totalorder %v488, 1
    %vm513 = vcmp.ge.s32.totalorder %v489, 1
    %vm514 = vcmp.ge.s32.totalorder %v490, 1
    %vm515 = vcmp.ge.s32.totalorder %v491, 1
    %vm516 = vcmp.ge.s32.totalorder %v492, 1
    %vm517 = vcmp.lt.s32.totalorder %v485, 511
    %vm518 = vcmp.lt.s32.totalorder %v486, 511
    %vm519 = vcmp.lt.s32.totalorder %v487, 511
    %vm520 = vcmp.lt.s32.totalorder %v488, 511
    %vm521 = vcmp.lt.s32.totalorder %v489, 511
    %vm522 = vcmp.lt.s32.totalorder %v490, 511
    %vm523 = vcmp.lt.s32.totalorder %v491, 511
    %vm524 = vcmp.lt.s32.totalorder %v492, 511
    %vm525 = vcmp.lt.s32.totalorder %v485, 510
    %vm526 = vcmp.lt.s32.totalorder %v486, 510
    %vm527 = vcmp.lt.s32.totalorder %v487, 510
    %vm528 = vcmp.lt.s32.totalorder %v488, 510
    %vm529 = vcmp.lt.s32.totalorder %v489, 510
    %vm530 = vcmp.lt.s32.totalorder %v490, 510
    %vm531 = vcmp.lt.s32.totalorder %v491, 510
    %vm532 = vcmp.lt.s32.totalorder %v492, 510
    %vm533 = vcmp.lt.s32.totalorder %v485, 509
    %vm534 = vcmp.lt.s32.totalorder %v486, 509
    %vm535 = vcmp.lt.s32.totalorder %v487, 509
    %vm536 = vcmp.lt.s32.totalorder %v488, 509
    %vm537 = vcmp.lt.s32.totalorder %v489, 509
    %vm538 = vcmp.lt.s32.totalorder %v490, 509
    %vm539 = vcmp.lt.s32.totalorder %v491, 509
    %vm540 = vcmp.lt.s32.totalorder %v492, 509
    %541 = vrot.lane.b32.xlu0 %v254, 3
    %v542 = vpop.permute.xlu0 %541
    %543 = vrot.lane.b32.xlu0 %v294, 3
    %v544 = vpop.permute.xlu0 %543
    %545 = vrot.lane.b32.xlu0 %v334, 3
    %v546 = vpop.permute.xlu0 %545
    %547 = vrot.lane.b32.xlu0 %v374, 3
    %v548 = vpop.permute.xlu0 %547
    %549 = vrot.lane.b32.xlu0 %v380, 3
    %v550 = vpop.permute.xlu0 %549
    %551 = vrot.lane.b32.xlu0 %v381, 3
    %v552 = vpop.permute.xlu0 %551
    %553 = vrot.lane.b32.xlu0 %v382, 3
    %v554 = vpop.permute.xlu0 %553
    %555 = vrot.lane.b32.xlu0 %v383, 3
    %v556 = vpop.permute.xlu0 %555
    %vm557 = vcmp.lt.s32.totalorder %v389, 3
    %v558 = vsel %vm557, %v554, %v556
    %v559 = vsel %vm557, %v552, %v554
    %v560 = vsel %vm557, %v550, %v552
    %v561 = vsel %vm557, %v548, %v550
    %v562 = vsel %vm557, %v546, %v548
    %v563 = vsel %vm557, %v544, %v546
    %v564 = vsel %vm557, %v542, %v544
    %v565 = vsel %vm557, %v556, %v542
    %v566 = vsel %vm493, 1, 0
    %v567 = vsel %vm494, 1, 0
    %v568 = vsel %vm495, 1, 0
    %v569 = vsel %vm496, 1, 0
    %v570 = vsel %vm497, 1, 0
    %v571 = vsel %vm498, 1, 0
    %v572 = vsel %vm499, 1, 0
    %v573 = vsel %vm500, 1, 0
    %vm574 = vcmp.eq.s32.totalorder %v566, 1
    %vm575 = vcmp.eq.s32.totalorder %v567, 1
    %vm576 = vcmp.eq.s32.totalorder %v568, 1
    %vm577 = vcmp.eq.s32.totalorder %v569, 1
    %vm578 = vcmp.eq.s32.totalorder %v570, 1
    %vm579 = vcmp.eq.s32.totalorder %v571, 1
    %vm580 = vcmp.eq.s32.totalorder %v572, 1
    %vm581 = vcmp.eq.s32.totalorder %v573, 1
    %v582 = vsel %vm574, %v565, 0.0
    %v583 = vsel %vm575, %v564, 0.0
    %v584 = vsel %vm576, %v563, 0.0
    %v585 = vsel %vm577, %v562, 0.0
    %v586 = vsel %vm578, %v561, 0.0
    %v587 = vsel %vm579, %v560, 0.0
    %v588 = vsel %vm580, %v559, 0.0
    %v589 = vsel %vm581, %v558, 0.0
    %590 = vrot.lane.b32.xlu0 %v254, 2
    %v591 = vpop.permute.xlu0 %590
    %592 = vrot.lane.b32.xlu0 %v294, 2
    %v593 = vpop.permute.xlu0 %592
    %594 = vrot.lane.b32.xlu0 %v334, 2
    %v595 = vpop.permute.xlu0 %594
    %596 = vrot.lane.b32.xlu0 %v374, 2
    %v597 = vpop.permute.xlu0 %596
    %598 = vrot.lane.b32.xlu0 %v380, 2
    %v599 = vpop.permute.xlu0 %598
    %600 = vrot.lane.b32.xlu0 %v381, 2
    %v601 = vpop.permute.xlu0 %600
    %602 = vrot.lane.b32.xlu0 %v382, 2
    %v603 = vpop.permute.xlu0 %602
    %604 = vrot.lane.b32.xlu0 %v383, 2
    %v605 = vpop.permute.xlu0 %604
    %vm606 = vcmp.lt.s32.totalorder %v389, 2
    %v607 = vsel %vm606, %v603, %v605
    %v608 = vsel %vm606, %v601, %v603
    %v609 = vsel %vm606, %v599, %v601
    %v610 = vsel %vm606, %v597, %v599
    %v611 = vsel %vm606, %v595, %v597
    %v612 = vsel %vm606, %v593, %v595
    %v613 = vsel %vm606, %v591, %v593
    %v614 = vsel %vm606, %v605, %v591
    %v615 = vsel %vm501, 1, 0
    %v616 = vsel %vm502, 1, 0
    %v617 = vsel %vm503, 1, 0
    %v618 = vsel %vm504, 1, 0
    %v619 = vsel %vm505, 1, 0
    %v620 = vsel %vm506, 1, 0
    %v621 = vsel %vm507, 1, 0
    %v622 = vsel %vm508, 1, 0
    %vm623 = vcmp.eq.s32.totalorder %v615, 1
    %vm624 = vcmp.eq.s32.totalorder %v616, 1
    %vm625 = vcmp.eq.s32.totalorder %v617, 1
    %vm626 = vcmp.eq.s32.totalorder %v618, 1
    %vm627 = vcmp.eq.s32.totalorder %v619, 1
    %vm628 = vcmp.eq.s32.totalorder %v620, 1
    %vm629 = vcmp.eq.s32.totalorder %v621, 1
    %vm630 = vcmp.eq.s32.totalorder %v622, 1
    %v631 = vsel %vm623, %v614, 0.0
    %v632 = vsel %vm624, %v613, 0.0
    %v633 = vsel %vm625, %v612, 0.0
    %v634 = vsel %vm626, %v611, 0.0
    %v635 = vsel %vm627, %v610, 0.0
    %v636 = vsel %vm628, %v609, 0.0
    %v637 = vsel %vm629, %v608, 0.0
    %v638 = vsel %vm630, %v607, 0.0
    %639 = vrot.lane.b32.xlu0 %v254, 1
    %v640 = vpop.permute.xlu0 %639
    %641 = vrot.lane.b32.xlu0 %v294, 1
    %v642 = vpop.permute.xlu0 %641
    %643 = vrot.lane.b32.xlu0 %v334, 1
    %v644 = vpop.permute.xlu0 %643
    %645 = vrot.lane.b32.xlu0 %v374, 1
    %v646 = vpop.permute.xlu0 %645
    %647 = vrot.lane.b32.xlu0 %v380, 1
    %v648 = vpop.permute.xlu0 %647
    %649 = vrot.lane.b32.xlu0 %v381, 1
    %v650 = vpop.permute.xlu0 %649
    %651 = vrot.lane.b32.xlu0 %v382, 1
    %v652 = vpop.permute.xlu0 %651
    %653 = vrot.lane.b32.xlu0 %v383, 1
    %v654 = vpop.permute.xlu0 %653
    %vm655 = vcmp.lt.s32.totalorder %v389, 1
    %v656 = vsel %vm655, %v652, %v654
    %v657 = vsel %vm655, %v650, %v652
    %v658 = vsel %vm655, %v648, %v650
    %v659 = vsel %vm655, %v646, %v648
    %v660 = vsel %vm655, %v644, %v646
    %v661 = vsel %vm655, %v642, %v644
    %v662 = vsel %vm655, %v640, %v642
    %v663 = vsel %vm655, %v654, %v640
    %v664 = vsel %vm509, 1, 0
    %v665 = vsel %vm510, 1, 0
    %v666 = vsel %vm511, 1, 0
    %v667 = vsel %vm512, 1, 0
    %v668 = vsel %vm513, 1, 0
    %v669 = vsel %vm514, 1, 0
    %v670 = vsel %vm515, 1, 0
    %v671 = vsel %vm516, 1, 0
    %vm672 = vcmp.eq.s32.totalorder %v664, 1
    %vm673 = vcmp.eq.s32.totalorder %v665, 1
    %vm674 = vcmp.eq.s32.totalorder %v666, 1
    %vm675 = vcmp.eq.s32.totalorder %v667, 1
    %vm676 = vcmp.eq.s32.totalorder %v668, 1
    %vm677 = vcmp.eq.s32.totalorder %v669, 1
    %vm678 = vcmp.eq.s32.totalorder %v670, 1
    %vm679 = vcmp.eq.s32.totalorder %v671, 1
    %v680 = vsel %vm672, %v663, 0.0
    %v681 = vsel %vm673, %v662, 0.0
    %v682 = vsel %vm674, %v661, 0.0
    %v683 = vsel %vm675, %v660, 0.0
    %v684 = vsel %vm676, %v659, 0.0
    %v685 = vsel %vm677, %v658, 0.0
    %v686 = vsel %vm678, %v657, 0.0
    %v687 = vsel %vm679, %v656, 0.0
    %688 = vrot.lane.b32.xlu0 %v254, 127
    %v689 = vpop.permute.xlu0 %688
    %690 = vrot.lane.b32.xlu0 %v294, 127
    %v691 = vpop.permute.xlu0 %690
    %692 = vrot.lane.b32.xlu0 %v334, 127
    %v693 = vpop.permute.xlu0 %692
    %694 = vrot.lane.b32.xlu0 %v374, 127
    %v695 = vpop.permute.xlu0 %694
    %696 = vrot.lane.b32.xlu0 %v380, 127
    %v697 = vpop.permute.xlu0 %696
    %698 = vrot.lane.b32.xlu0 %v381, 127
    %v699 = vpop.permute.xlu0 %698
    %700 = vrot.lane.b32.xlu0 %v382, 127
    %v701 = vpop.permute.xlu0 %700
    %702 = vrot.lane.b32.xlu0 %v383, 127
    %v703 = vpop.permute.xlu0 %702
    %vm704 = vcmp.lt.s32.totalorder %v389, 127
    %v705 = vsel %vm704, %v701, %v703
    %v706 = vsel %vm704, %v699, %v701
    %v707 = vsel %vm704, %v697, %v699
    %v708 = vsel %vm704, %v695, %v697
    %v709 = vsel %vm704, %v693, %v695
    %v710 = vsel %vm704, %v691, %v693
    %v711 = vsel %vm704, %v689, %v691
    %v712 = vsel %vm704, %v703, %v689
    %v713 = vsel %vm517, 1, 0
    %v714 = vsel %vm518, 1, 0
    %v715 = vsel %vm519, 1, 0
    %v716 = vsel %vm520, 1, 0
    %v717 = vsel %vm521, 1, 0
    %v718 = vsel %vm522, 1, 0
    %v719 = vsel %vm523, 1, 0
    %v720 = vsel %vm524, 1, 0
    %vm721 = vcmp.eq.s32.totalorder %v713, 1
    %vm722 = vcmp.eq.s32.totalorder %v714, 1
    %vm723 = vcmp.eq.s32.totalorder %v715, 1
    %vm724 = vcmp.eq.s32.totalorder %v716, 1
    %vm725 = vcmp.eq.s32.totalorder %v717, 1
    %vm726 = vcmp.eq.s32.totalorder %v718, 1
    %vm727 = vcmp.eq.s32.totalorder %v719, 1
    %vm728 = vcmp.eq.s32.totalorder %v720, 1
    %v729 = vsel %vm721, %v711, 0.0
    %v730 = vsel %vm722, %v710, 0.0
    %v731 = vsel %vm723, %v709, 0.0
    %v732 = vsel %vm724, %v708, 0.0
    %v733 = vsel %vm725, %v707, 0.0
    %v734 = vsel %vm726, %v706, 0.0
    %v735 = vsel %vm727, %v705, 0.0
    %v736 = vsel %vm728, %v712, 0.0
    %737 = vrot.lane.b32.xlu0 %v254, 126
    %v738 = vpop.permute.xlu0 %737
    %739 = vrot.lane.b32.xlu0 %v294, 126
    %v740 = vpop.permute.xlu0 %739
    %741 = vrot.lane.b32.xlu0 %v334, 126
    %v742 = vpop.permute.xlu0 %741
    %743 = vrot.lane.b32.xlu0 %v374, 126
    %v744 = vpop.permute.xlu0 %743
    %745 = vrot.lane.b32.xlu0 %v380, 126
    %v746 = vpop.permute.xlu0 %745
    %747 = vrot.lane.b32.xlu0 %v381, 126
    %v748 = vpop.permute.xlu0 %747
    %749 = vrot.lane.b32.xlu0 %v382, 126
    %v750 = vpop.permute.xlu0 %749
    %751 = vrot.lane.b32.xlu0 %v383, 126
    %v752 = vpop.permute.xlu0 %751
    %vm753 = vcmp.lt.s32.totalorder %v389, 126
    %v754 = vsel %vm753, %v750, %v752
    %v755 = vsel %vm753, %v748, %v750
    %v756 = vsel %vm753, %v746, %v748
    %v757 = vsel %vm753, %v744, %v746
    %v758 = vsel %vm753, %v742, %v744
    %v759 = vsel %vm753, %v740, %v742
    %v760 = vsel %vm753, %v738, %v740
    %v761 = vsel %vm753, %v752, %v738
    %v762 = vsel %vm525, 1, 0
    %v763 = vsel %vm526, 1, 0
    %v764 = vsel %vm527, 1, 0
    %v765 = vsel %vm528, 1, 0
    %v766 = vsel %vm529, 1, 0
    %v767 = vsel %vm530, 1, 0
    %v768 = vsel %vm531, 1, 0
    %v769 = vsel %vm532, 1, 0
    %vm770 = vcmp.eq.s32.totalorder %v762, 1
    %vm771 = vcmp.eq.s32.totalorder %v763, 1
    %vm772 = vcmp.eq.s32.totalorder %v764, 1
    %vm773 = vcmp.eq.s32.totalorder %v765, 1
    %vm774 = vcmp.eq.s32.totalorder %v766, 1
    %vm775 = vcmp.eq.s32.totalorder %v767, 1
    %vm776 = vcmp.eq.s32.totalorder %v768, 1
    %vm777 = vcmp.eq.s32.totalorder %v769, 1
    %v778 = vsel %vm770, %v760, 0.0
    %v779 = vsel %vm771, %v759, 0.0
    %v780 = vsel %vm772, %v758, 0.0
    %v781 = vsel %vm773, %v757, 0.0
    %v782 = vsel %vm774, %v756, 0.0
    %v783 = vsel %vm775, %v755, 0.0
    %v784 = vsel %vm776, %v754, 0.0
    %v785 = vsel %vm777, %v761, 0.0
    %786 = vrot.lane.b32.xlu0 %v254, 125
    %v787 = vpop.permute.xlu0 %786
    %788 = vrot.lane.b32.xlu0 %v294, 125
    %v789 = vpop.permute.xlu0 %788
    %790 = vrot.lane.b32.xlu0 %v334, 125
    %v791 = vpop.permute.xlu0 %790
    %792 = vrot.lane.b32.xlu0 %v374, 125
    %v793 = vpop.permute.xlu0 %792
    %794 = vrot.lane.b32.xlu0 %v380, 125
    %v795 = vpop.permute.xlu0 %794
    %796 = vrot.lane.b32.xlu0 %v381, 125
    %v797 = vpop.permute.xlu0 %796
    %798 = vrot.lane.b32.xlu0 %v382, 125
    %v799 = vpop.permute.xlu0 %798
    %800 = vrot.lane.b32.xlu0 %v383, 125
    %v801 = vpop.permute.xlu0 %800
    %vm802 = vcmp.lt.s32.totalorder %v389, 125
    %v803 = vsel %vm802, %v799, %v801
    %v804 = vsel %vm802, %v797, %v799
    %v805 = vsel %vm802, %v795, %v797
    %v806 = vsel %vm802, %v793, %v795
    %v807 = vsel %vm802, %v791, %v793
    %v808 = vsel %vm802, %v789, %v791
    %v809 = vsel %vm802, %v787, %v789
    %v810 = vsel %vm802, %v801, %v787
    %v811 = vsel %vm533, 1, 0
    %v812 = vsel %vm534, 1, 0
    %v813 = vsel %vm535, 1, 0
    %v814 = vsel %vm536, 1, 0
    %v815 = vsel %vm537, 1, 0
    %v816 = vsel %vm538, 1, 0
    %v817 = vsel %vm539, 1, 0
    %v818 = vsel %vm540, 1, 0
    %vm819 = vcmp.eq.s32.totalorder %v811, 1
    %vm820 = vcmp.eq.s32.totalorder %v812, 1
    %vm821 = vcmp.eq.s32.totalorder %v813, 1
    %vm822 = vcmp.eq.s32.totalorder %v814, 1
    %vm823 = vcmp.eq.s32.totalorder %v815, 1
    %vm824 = vcmp.eq.s32.totalorder %v816, 1
    %vm825 = vcmp.eq.s32.totalorder %v817, 1
    %vm826 = vcmp.eq.s32.totalorder %v818, 1
    %v827 = vsel %vm819, %v809, 0.0
    %v828 = vsel %vm820, %v808, 0.0
    %v829 = vsel %vm821, %v807, 0.0
    %v830 = vsel %vm822, %v806, 0.0
    %v831 = vsel %vm823, %v805, 0.0
    %v832 = vsel %vm824, %v804, 0.0
    %v833 = vsel %vm825, %v803, 0.0
    %v834 = vsel %vm826, %v810, 0.0
    %v843 = vrot.slane %v631, 4
    %v844 = vrot.slane %v632, 4
    %v845 = vrot.slane %v633, 4
    %v846 = vrot.slane %v634, 4
    %v847 = vrot.slane %v635, 4
    %v848 = vrot.slane %v636, 4
    %v849 = vrot.slane %v637, 4
    %v850 = vrot.slane %v638, 4
    %v859 = vrot.slane %v380, 4
    %v860 = vrot.slane %v381, 4
    %v861 = vrot.slane %v382, 4
    %v862 = vrot.slane %v383, 4
    %v875 = vrot.slane %v778, 4
    %v876 = vrot.slane %v779, 4
    %v877 = vrot.slane %v780, 4
    %v878 = vrot.slane %v781, 4
    %v879 = vrot.slane %v782, 4
    %v880 = vrot.slane %v783, 4
    %v881 = vrot.slane %v784, 4
    %v882 = vrot.slane %v785, 4
    %vm891 = vcmask 1043456
    %v892 = vsel %vm891, %v582, %v843
    %v893 = vsel %vm891, %v583, %v844
    %v894 = vsel %vm891, %v584, %v845
    %v895 = vsel %vm891, %v585, %v846
    %v896 = vsel %vm891, %v586, %v847
    %v897 = vsel %vm891, %v587, %v848
    %v898 = vsel %vm891, %v588, %v849
    %v899 = vsel %vm891, %v589, %v850
    %v900 = vsel %vm891, %v680, %v380
    %v901 = vsel %vm891, %v681, %v381
    %v902 = vsel %vm891, %v682, %v382
    %v903 = vsel %vm891, %v683, %v383
    %v904 = vsel %vm891, %v684, %v859
    %v905 = vsel %vm891, %v685, %v860
    %v906 = vsel %vm891, %v686, %v861
    %v907 = vsel %vm891, %v687, %v862
    %v908 = vsel %vm891, %v729, %v875
    %v909 = vsel %vm891, %v730, %v876
    %v910 = vsel %vm891, %v731, %v877
    %v911 = vsel %vm891, %v732, %v878
    %v912 = vsel %vm891, %v733, %v879
    %v913 = vsel %vm891, %v734, %v880
    %v914 = vsel %vm891, %v735, %v881
    %v915 = vsel %vm891, %v736, %v882
    %v916 = vld [vmem:[%s3] sm:$0xf]
    %v917 = vld [vmem:[%s4] sm:$0xf]
    %919 = vset.pattern.permute.xlu0 0
    %920 = vperm.xlu0 %919, %v917
    %v921 = vpop.permute.xlu0 %920
    %vm923 = vcmask 228352
    %v925 = vsel %vm923, %v916, 0
    %v928 = vsel %vm891, %v827, 0
    %v931 = vsel %vm891, %v828, 0
    %v934 = vsel %vm891, %v829, 0
    %v937 = vsel %vm891, %v830, 0
    %v940 = vsel %vm891, %v831, 0
    %v943 = vsel %vm891, %v832, 0
    %v946 = vsel %vm891, %v833, 0
    %v949 = vsel %vm891, %v834, 0
    %951 = vmatpush.msra.mxu0 0.0
    %952 = vmatpush.msra.mxu0 0.0
    %953 = vmatpush.msra.mxu0 0.0
    %954 = vmatpush.msra.mxu0 0.0
    %955 = vmatpush.msra.mxu0 0.0
    %956 = vmatpush.msra.mxu0 0.0
    %957 = vmatpush.msra.mxu0 0.0
    %958 = vmatpush.msra.mxu0 0.0
    %959 = vmatpush.msra.mxu0 0.0
    %960 = vmatpush.msra.mxu0 0.0
    %961 = vmatpush.msra.mxu0 0.0
    %962 = vmatpush.msra.mxu0 0.0
    %963 = vmatpush.msra.mxu0 %v928
    %964 = vmatpush.msra.mxu0 %v908
    %965 = vmatpush.msra.mxu0 %v900
    %966 = vmatpush.msra.mxu0 %v892
    %967 = vmatmul.f32.gmra.mxu0 %v925
    %v968 = vpop.f32.mrf.mxu0
    %v969 = vadd.f32 %v921, %v968
    %970 = vdwg.mxu0
    %971 = vmatpush.msra.mxu0 0.0
    %972 = vmatpush.msra.mxu0 0.0
    %973 = vmatpush.msra.mxu0 0.0
    %974 = vmatpush.msra.mxu0 0.0
    %975 = vmatpush.msra.mxu0 0.0
    %976 = vmatpush.msra.mxu0 0.0
    %977 = vmatpush.msra.mxu0 0.0
    %978 = vmatpush.msra.mxu0 0.0
    %979 = vmatpush.msra.mxu0 0.0
    %980 = vmatpush.msra.mxu0 0.0
    %981 = vmatpush.msra.mxu0 0.0
    %982 = vmatpush.msra.mxu0 0.0
    %983 = vmatpush.msra.mxu0 %v931
    %984 = vmatpush.msra.mxu0 %v909
    %985 = vmatpush.msra.mxu0 %v901
    %986 = vmatpush.msra.mxu0 %v893
    %987 = vmatmul.f32.gmra.mxu0 %v925
    %v988 = vpop.f32.mrf.mxu0
    %v989 = vadd.f32 %v921, %v988
    %990 = vdwg.mxu0
    %991 = vmatpush.msra.mxu0 0.0
    %992 = vmatpush.msra.mxu0 0.0
    %993 = vmatpush.msra.mxu0 0.0
    %994 = vmatpush.msra.mxu0 0.0
    %995 = vmatpush.msra.mxu0 0.0
    %996 = vmatpush.msra.mxu0 0.0
    %997 = vmatpush.msra.mxu0 0.0
    %998 = vmatpush.msra.mxu0 0.0
    %999 = vmatpush.msra.mxu0 0.0
    %1000 = vmatpush.msra.mxu0 0.0
    %1001 = vmatpush.msra.mxu0 0.0
    %1002 = vmatpush.msra.mxu0 0.0
    %1003 = vmatpush.msra.mxu0 %v934
    %1004 = vmatpush.msra.mxu0 %v910
    %1005 = vmatpush.msra.mxu0 %v902
    %1006 = vmatpush.msra.mxu0 %v894
    %1007 = vmatmul.f32.gmra.mxu0 %v925
    %v1008 = vpop.f32.mrf.mxu0
    %v1009 = vadd.f32 %v921, %v1008
    %1010 = vdwg.mxu0
    %1011 = vmatpush.msra.mxu0 0.0
    %1012 = vmatpush.msra.mxu0 0.0
    %1013 = vmatpush.msra.mxu0 0.0
    %1014 = vmatpush.msra.mxu0 0.0
    %1015 = vmatpush.msra.mxu0 0.0
    %1016 = vmatpush.msra.mxu0 0.0
    %1017 = vmatpush.msra.mxu0 0.0
    %1018 = vmatpush.msra.mxu0 0.0
    %1019 = vmatpush.msra.mxu0 0.0
    %1020 = vmatpush.msra.mxu0 0.0
    %1021 = vmatpush.msra.mxu0 0.0
    %1022 = vmatpush.msra.mxu0 0.0
    %1023 = vmatpush.msra.mxu0 %v937
    %1024 = vmatpush.msra.mxu0 %v911
    %1025 = vmatpush.msra.mxu0 %v903
    %1026 = vmatpush.msra.mxu0 %v895
    %1027 = vmatmul.f32.gmra.mxu0 %v925
    %v1028 = vpop.f32.mrf.mxu0
    %v1029 = vadd.f32 %v921, %v1028
    %1030 = vdwg.mxu0
    %1031 = vmatpush.msra.mxu0 0.0
    %1032 = vmatpush.msra.mxu0 0.0
    %1033 = vmatpush.msra.mxu0 0.0
    %1034 = vmatpush.msra.mxu0 0.0
    %1035 = vmatpush.msra.mxu0 0.0
    %1036 = vmatpush.msra.mxu0 0.0
    %1037 = vmatpush.msra.mxu0 0.0
    %1038 = vmatpush.msra.mxu0 0.0
    %1039 = vmatpush.msra.mxu0 0.0
    %1040 = vmatpush.msra.mxu0 0.0
    %1041 = vmatpush.msra.mxu0 0.0
    %1042 = vmatpush.msra.mxu0 0.0
    %1043 = vmatpush.msra.mxu0 %v940
    %1044 = vmatpush.msra.mxu0 %v912
    %1045 = vmatpush.msra.mxu0 %v904
    %1046 = vmatpush.msra.mxu0 %v896
    %1047 = vmatmul.f32.gmra.mxu0 %v925
    %v1048 = vpop.f32.mrf.mxu0
    %v1049 = vadd.f32 %v921, %v1048
    %1050 = vdwg.mxu0
    %1051 = vmatpush.msra.mxu0 0.0
    %1052 = vmatpush.msra.mxu0 0.0
    %1053 = vmatpush.msra.mxu0 0.0
    %1054 = vmatpush.msra.mxu0 0.0
    %1055 = vmatpush.msra.mxu0 0.0
    %1056 = vmatpush.msra.mxu0 0.0
    %1057 = vmatpush.msra.mxu0 0.0
    %1058 = vmatpush.msra.mxu0 0.0
    %1059 = vmatpush.msra.mxu0 0.0
    %1060 = vmatpush.msra.mxu0 0.0
    %1061 = vmatpush.msra.mxu0 0.0
    %1062 = vmatpush.msra.mxu0 0.0
    %1063 = vmatpush.msra.mxu0 %v943
    %1064 = vmatpush.msra.mxu0 %v913
    %1065 = vmatpush.msra.mxu0 %v905
    %1066 = vmatpush.msra.mxu0 %v897
    %1067 = vmatmul.f32.gmra.mxu0 %v925
    %v1068 = vpop.f32.mrf.mxu0
    %v1069 = vadd.f32 %v921, %v1068
    %1070 = vdwg.mxu0
    %1071 = vmatpush.msra.mxu0 0.0
    %1072 = vmatpush.msra.mxu0 0.0
    %1073 = vmatpush.msra.mxu0 0.0
    %1074 = vmatpush.msra.mxu0 0.0
    %1075 = vmatpush.msra.mxu0 0.0
    %1076 = vmatpush.msra.mxu0 0.0
    %1077 = vmatpush.msra.mxu0 0.0
    %1078 = vmatpush.msra.mxu0 0.0
    %1079 = vmatpush.msra.mxu0 0.0
    %1080 = vmatpush.msra.mxu0 0.0
    %1081 = vmatpush.msra.mxu0 0.0
    %1082 = vmatpush.msra.mxu0 0.0
    %1083 = vmatpush.msra.mxu0 %v946
    %1084 = vmatpush.msra.mxu0 %v914
    %1085 = vmatpush.msra.mxu0 %v906
    %1086 = vmatpush.msra.mxu0 %v898
    %1087 = vmatmul.f32.gmra.mxu0 %v925
    %v1088 = vpop.f32.mrf.mxu0
    %v1089 = vadd.f32 %v921, %v1088
    %1090 = vdwg.mxu0
    %1091 = vmatpush.msra.mxu0 0.0
    %1092 = vmatpush.msra.mxu0 0.0
    %1093 = vmatpush.msra.mxu0 0.0
    %1094 = vmatpush.msra.mxu0 0.0
    %1095 = vmatpush.msra.mxu0 0.0
    %1096 = vmatpush.msra.mxu0 0.0
    %1097 = vmatpush.msra.mxu0 0.0
    %1098 = vmatpush.msra.mxu0 0.0
    %1099 = vmatpush.msra.mxu0 0.0
    %1100 = vmatpush.msra.mxu0 0.0
    %1101 = vmatpush.msra.mxu0 0.0
    %1102 = vmatpush.msra.mxu0 0.0
    %1103 = vmatpush.msra.mxu0 %v949
    %1104 = vmatpush.msra.mxu0 %v915
    %1105 = vmatpush.msra.mxu0 %v907
    %1106 = vmatpush.msra.mxu0 %v899
    %1107 = vmatmul.f32.gmra.mxu0 %v925
    %v1108 = vpop.f32.mrf.mxu0
    %v1109 = vadd.f32 %v921, %v1108
    %1110 = vdwg.mxu0
    %v1111 = vsel %vm891, %v969, 0.0
    %v1112 = vsel %vm891, %v989, 0.0
    %v1113 = vadd.f32 %v1111, %v1112
    %v1114 = vsel %vm891, %v1009, 0.0
    %v1115 = vadd.f32 %v1113, %v1114
    %v1116 = vsel %vm891, %v1029, 0.0
    %v1117 = vadd.f32 %v1115, %v1116
    %v1118 = vsel %vm891, %v1049, 0.0
    %v1119 = vadd.f32 %v1117, %v1118
    %v1120 = vsel %vm891, %v1069, 0.0
    %v1121 = vadd.f32 %v1119, %v1120
    %v1122 = vsel %vm891, %v1089, 0.0
    %v1123 = vadd.f32 %v1121, %v1122
    %v1124 = vsel %vm891, %v1109, 0.0
    %v1125 = vadd.f32 %v1123, %v1124
    %1126 = vadd.xlane.f32.xlu0 %v1125
    %v1127 = vpop.xlane.xlu0 %1126
    %v1128 = vmul.f32 %v1127, 0.0009765625
    %v1129 = vsub.f32 %v969, %v1128
    %v1130 = vsub.f32 %v989, %v1128
    %v1131 = vsub.f32 %v1009, %v1128
    %v1132 = vsub.f32 %v1029, %v1128
    %v1133 = vsub.f32 %v1049, %v1128
    %v1134 = vsub.f32 %v1069, %v1128
    %v1135 = vsub.f32 %v1089, %v1128
    %v1136 = vsub.f32 %v1109, %v1128
    %v1137 = vmul.f32 %v1129, %v1129
    %v1138 = vmul.f32 %v1130, %v1130
    %v1139 = vmul.f32 %v1131, %v1131
    %v1140 = vmul.f32 %v1132, %v1132
    %v1141 = vmul.f32 %v1133, %v1133
    %v1142 = vmul.f32 %v1134, %v1134
    %v1143 = vmul.f32 %v1135, %v1135
    %v1144 = vmul.f32 %v1136, %v1136
    %v1145 = vsel %vm891, %v1137, 0.0
    %v1146 = vsel %vm891, %v1138, 0.0
    %v1147 = vadd.f32 %v1145, %v1146
    %v1148 = vsel %vm891, %v1139, 0.0
    %v1149 = vadd.f32 %v1147, %v1148
    %v1150 = vsel %vm891, %v1140, 0.0
    %v1151 = vadd.f32 %v1149, %v1150
    %v1152 = vsel %vm891, %v1141, 0.0
    %v1153 = vadd.f32 %v1151, %v1152
    %v1154 = vsel %vm891, %v1142, 0.0
    %v1155 = vadd.f32 %v1153, %v1154
    %v1156 = vsel %vm891, %v1143, 0.0
    %v1157 = vadd.f32 %v1155, %v1156
    %v1158 = vsel %vm891, %v1144, 0.0
    %v1159 = vadd.f32 %v1157, %v1158
    %1160 = vadd.xlane.f32.xlu0 %v1159
    %v1161 = vpop.xlane.xlu0 %1160
    %v1162 = vmul.f32 %v1161, 0.0009765625
    %v1163 = vld [vmem:[%s5] sm:$0xf]
    %v1164 = vadd.f32 %v1162, 1e-05
    %v1165 = vrsqrt.pop %v1164
    %v1166 = vmul.f32 %v1165, %v1164
    %v1167 = vmul.f32 %v1166, %v1165
    %v1168 = vmul.f32 0.5, %v1167
    %v1169 = vsub.f32 1.5, %v1168
    %v1170 = vmul.f32 %v1165, %v1169
    %vm1171 = vweird.f32 %v1164
    %vm1172 = vweird.f32 %v1165
    %vm1173 = vmor %vm1171, %vm1172
    %v1174 = vsel %vm1173, %v1165, %v1170
    %v1175 = vmul.f32 %v1163, %v1174
    %1177 = vset.pattern.permute.xlu0 0
    %1178 = vperm.xlu0 %1177, %v1175
    %v1179 = vpop.permute.xlu0 %1178
    %v1181 = vmul.f32 %v1129, %v1179
    %v1182 = vmul.f32 %v1130, %v1179
    %v1183 = vmul.f32 %v1131, %v1179
    %v1184 = vmul.f32 %v1132, %v1179
    %v1185 = vmul.f32 %v1133, %v1179
    %v1186 = vmul.f32 %v1134, %v1179
    %v1187 = vmul.f32 %v1135, %v1179
    %v1188 = vmul.f32 %v1136, %v1179
    %v1189 = vld [vmem:[%s6] sm:$0xf]
    %1191 = vset.pattern.permute.xlu0 0
    %1192 = vperm.xlu0 %1191, %v1189
    %v1193 = vpop.permute.xlu0 %1192
    %v1195 = vadd.f32 %v1181, %v1193
    %v1196 = vadd.f32 %v1182, %v1193
    %v1197 = vadd.f32 %v1183, %v1193
    %v1198 = vadd.f32 %v1184, %v1193
    %v1199 = vadd.f32 %v1185, %v1193
    %v1200 = vadd.f32 %v1186, %v1193
    %v1201 = vadd.f32 %v1187, %v1193
    %v1202 = vadd.f32 %v1188, %v1193
    %v1203 = vmax.f32 %v1195, 0.0
    %v1204 = vmax.f32 %v1196, 0.0
    %v1205 = vmax.f32 %v1197, 0.0
    %v1206 = vmax.f32 %v1198, 0.0
    %v1207 = vmax.f32 %v1199, 0.0
    %v1208 = vmax.f32 %v1200, 0.0
    %v1209 = vmax.f32 %v1201, 0.0
    %v1210 = vmax.f32 %v1202, 0.0
    %1211 = vrot.lane.b32.xlu0 %v1203, 3
    %v1212 = vpop.permute.xlu0 %1211
    %1213 = vrot.lane.b32.xlu0 %v1204, 3
    %v1214 = vpop.permute.xlu0 %1213
    %1215 = vrot.lane.b32.xlu0 %v1205, 3
    %v1216 = vpop.permute.xlu0 %1215
    %1217 = vrot.lane.b32.xlu0 %v1206, 3
    %v1218 = vpop.permute.xlu0 %1217
    %1219 = vrot.lane.b32.xlu0 %v1207, 3
    %v1220 = vpop.permute.xlu0 %1219
    %1221 = vrot.lane.b32.xlu0 %v1208, 3
    %v1222 = vpop.permute.xlu0 %1221
    %1223 = vrot.lane.b32.xlu0 %v1209, 3
    %v1224 = vpop.permute.xlu0 %1223
    %1225 = vrot.lane.b32.xlu0 %v1210, 3
    %v1226 = vpop.permute.xlu0 %1225
    %v1227 = vsel %vm557, %v1224, %v1226
    %v1228 = vsel %vm557, %v1222, %v1224
    %v1229 = vsel %vm557, %v1220, %v1222
    %v1230 = vsel %vm557, %v1218, %v1220
    %v1231 = vsel %vm557, %v1216, %v1218
    %v1232 = vsel %vm557, %v1214, %v1216
    %v1233 = vsel %vm557, %v1212, %v1214
    %v1234 = vsel %vm557, %v1226, %v1212
    %v1235 = vsel %vm574, %v1234, 0.0
    %v1236 = vsel %vm575, %v1233, 0.0
    %v1237 = vsel %vm576, %v1232, 0.0
    %v1238 = vsel %vm577, %v1231, 0.0
    %v1239 = vsel %vm578, %v1230, 0.0
    %v1240 = vsel %vm579, %v1229, 0.0
    %v1241 = vsel %vm580, %v1228, 0.0
    %v1242 = vsel %vm581, %v1227, 0.0
    %1243 = vrot.lane.b32.xlu0 %v1203, 2
    %v1244 = vpop.permute.xlu0 %1243
    %1245 = vrot.lane.b32.xlu0 %v1204, 2
    %v1246 = vpop.permute.xlu0 %1245
    %1247 = vrot.lane.b32.xlu0 %v1205, 2
    %v1248 = vpop.permute.xlu0 %1247
    %1249 = vrot.lane.b32.xlu0 %v1206, 2
    %v1250 = vpop.permute.xlu0 %1249
    %1251 = vrot.lane.b32.xlu0 %v1207, 2
    %v1252 = vpop.permute.xlu0 %1251
    %1253 = vrot.lane.b32.xlu0 %v1208, 2
    %v1254 = vpop.permute.xlu0 %1253
    %1255 = vrot.lane.b32.xlu0 %v1209, 2
    %v1256 = vpop.permute.xlu0 %1255
    %1257 = vrot.lane.b32.xlu0 %v1210, 2
    %v1258 = vpop.permute.xlu0 %1257
    %v1259 = vsel %vm606, %v1256, %v1258
    %v1260 = vsel %vm606, %v1254, %v1256
    %v1261 = vsel %vm606, %v1252, %v1254
    %v1262 = vsel %vm606, %v1250, %v1252
    %v1263 = vsel %vm606, %v1248, %v1250
    %v1264 = vsel %vm606, %v1246, %v1248
    %v1265 = vsel %vm606, %v1244, %v1246
    %v1266 = vsel %vm606, %v1258, %v1244
    %v1267 = vsel %vm623, %v1266, 0.0
    %v1268 = vsel %vm624, %v1265, 0.0
    %v1269 = vsel %vm625, %v1264, 0.0
    %v1270 = vsel %vm626, %v1263, 0.0
    %v1271 = vsel %vm627, %v1262, 0.0
    %v1272 = vsel %vm628, %v1261, 0.0
    %v1273 = vsel %vm629, %v1260, 0.0
    %v1274 = vsel %vm630, %v1259, 0.0
    %1275 = vrot.lane.b32.xlu0 %v1203, 1
    %v1276 = vpop.permute.xlu0 %1275
    %1277 = vrot.lane.b32.xlu0 %v1204, 1
    %v1278 = vpop.permute.xlu0 %1277
    %1279 = vrot.lane.b32.xlu0 %v1205, 1
    %v1280 = vpop.permute.xlu0 %1279
    %1281 = vrot.lane.b32.xlu0 %v1206, 1
    %v1282 = vpop.permute.xlu0 %1281
    %1283 = vrot.lane.b32.xlu0 %v1207, 1
    %v1284 = vpop.permute.xlu0 %1283
    %1285 = vrot.lane.b32.xlu0 %v1208, 1
    %v1286 = vpop.permute.xlu0 %1285
    %1287 = vrot.lane.b32.xlu0 %v1209, 1
    %v1288 = vpop.permute.xlu0 %1287
    %1289 = vrot.lane.b32.xlu0 %v1210, 1
    %v1290 = vpop.permute.xlu0 %1289
    %v1291 = vsel %vm655, %v1288, %v1290
    %v1292 = vsel %vm655, %v1286, %v1288
    %v1293 = vsel %vm655, %v1284, %v1286
    %v1294 = vsel %vm655, %v1282, %v1284
    %v1295 = vsel %vm655, %v1280, %v1282
    %v1296 = vsel %vm655, %v1278, %v1280
    %v1297 = vsel %vm655, %v1276, %v1278
    %v1298 = vsel %vm655, %v1290, %v1276
    %v1299 = vsel %vm672, %v1298, 0.0
    %v1300 = vsel %vm673, %v1297, 0.0
    %v1301 = vsel %vm674, %v1296, 0.0
    %v1302 = vsel %vm675, %v1295, 0.0
    %v1303 = vsel %vm676, %v1294, 0.0
    %v1304 = vsel %vm677, %v1293, 0.0
    %v1305 = vsel %vm678, %v1292, 0.0
    %v1306 = vsel %vm679, %v1291, 0.0
    %1307 = vrot.lane.b32.xlu0 %v1203, 127
    %v1308 = vpop.permute.xlu0 %1307
    %1309 = vrot.lane.b32.xlu0 %v1204, 127
    %v1310 = vpop.permute.xlu0 %1309
    %1311 = vrot.lane.b32.xlu0 %v1205, 127
    %v1312 = vpop.permute.xlu0 %1311
    %1313 = vrot.lane.b32.xlu0 %v1206, 127
    %v1314 = vpop.permute.xlu0 %1313
    %1315 = vrot.lane.b32.xlu0 %v1207, 127
    %v1316 = vpop.permute.xlu0 %1315
    %1317 = vrot.lane.b32.xlu0 %v1208, 127
    %v1318 = vpop.permute.xlu0 %1317
    %1319 = vrot.lane.b32.xlu0 %v1209, 127
    %v1320 = vpop.permute.xlu0 %1319
    %1321 = vrot.lane.b32.xlu0 %v1210, 127
    %v1322 = vpop.permute.xlu0 %1321
    %v1323 = vsel %vm704, %v1320, %v1322
    %v1324 = vsel %vm704, %v1318, %v1320
    %v1325 = vsel %vm704, %v1316, %v1318
    %v1326 = vsel %vm704, %v1314, %v1316
    %v1327 = vsel %vm704, %v1312, %v1314
    %v1328 = vsel %vm704, %v1310, %v1312
    %v1329 = vsel %vm704, %v1308, %v1310
    %v1330 = vsel %vm704, %v1322, %v1308
    %v1331 = vsel %vm721, %v1329, 0.0
    %v1332 = vsel %vm722, %v1328, 0.0
    %v1333 = vsel %vm723, %v1327, 0.0
    %v1334 = vsel %vm724, %v1326, 0.0
    %v1335 = vsel %vm725, %v1325, 0.0
    %v1336 = vsel %vm726, %v1324, 0.0
    %v1337 = vsel %vm727, %v1323, 0.0
    %v1338 = vsel %vm728, %v1330, 0.0
    %1339 = vrot.lane.b32.xlu0 %v1203, 126
    %v1340 = vpop.permute.xlu0 %1339
    %1341 = vrot.lane.b32.xlu0 %v1204, 126
    %v1342 = vpop.permute.xlu0 %1341
    %1343 = vrot.lane.b32.xlu0 %v1205, 126
    %v1344 = vpop.permute.xlu0 %1343
    %1345 = vrot.lane.b32.xlu0 %v1206, 126
    %v1346 = vpop.permute.xlu0 %1345
    %1347 = vrot.lane.b32.xlu0 %v1207, 126
    %v1348 = vpop.permute.xlu0 %1347
    %1349 = vrot.lane.b32.xlu0 %v1208, 126
    %v1350 = vpop.permute.xlu0 %1349
    %1351 = vrot.lane.b32.xlu0 %v1209, 126
    %v1352 = vpop.permute.xlu0 %1351
    %1353 = vrot.lane.b32.xlu0 %v1210, 126
    %v1354 = vpop.permute.xlu0 %1353
    %v1355 = vsel %vm753, %v1352, %v1354
    %v1356 = vsel %vm753, %v1350, %v1352
    %v1357 = vsel %vm753, %v1348, %v1350
    %v1358 = vsel %vm753, %v1346, %v1348
    %v1359 = vsel %vm753, %v1344, %v1346
    %v1360 = vsel %vm753, %v1342, %v1344
    %v1361 = vsel %vm753, %v1340, %v1342
    %v1362 = vsel %vm753, %v1354, %v1340
    %v1363 = vsel %vm770, %v1361, 0.0
    %v1364 = vsel %vm771, %v1360, 0.0
    %v1365 = vsel %vm772, %v1359, 0.0
    %v1366 = vsel %vm773, %v1358, 0.0
    %v1367 = vsel %vm774, %v1357, 0.0
    %v1368 = vsel %vm775, %v1356, 0.0
    %v1369 = vsel %vm776, %v1355, 0.0
    %v1370 = vsel %vm777, %v1362, 0.0
    %1371 = vrot.lane.b32.xlu0 %v1203, 125
    %v1372 = vpop.permute.xlu0 %1371
    %1373 = vrot.lane.b32.xlu0 %v1204, 125
    %v1374 = vpop.permute.xlu0 %1373
    %1375 = vrot.lane.b32.xlu0 %v1205, 125
    %v1376 = vpop.permute.xlu0 %1375
    %1377 = vrot.lane.b32.xlu0 %v1206, 125
    %v1378 = vpop.permute.xlu0 %1377
    %1379 = vrot.lane.b32.xlu0 %v1207, 125
    %v1380 = vpop.permute.xlu0 %1379
    %1381 = vrot.lane.b32.xlu0 %v1208, 125
    %v1382 = vpop.permute.xlu0 %1381
    %1383 = vrot.lane.b32.xlu0 %v1209, 125
    %v1384 = vpop.permute.xlu0 %1383
    %1385 = vrot.lane.b32.xlu0 %v1210, 125
    %v1386 = vpop.permute.xlu0 %1385
    %v1387 = vsel %vm802, %v1384, %v1386
    %v1388 = vsel %vm802, %v1382, %v1384
    %v1389 = vsel %vm802, %v1380, %v1382
    %v1390 = vsel %vm802, %v1378, %v1380
    %v1391 = vsel %vm802, %v1376, %v1378
    %v1392 = vsel %vm802, %v1374, %v1376
    %v1393 = vsel %vm802, %v1372, %v1374
    %v1394 = vsel %vm802, %v1386, %v1372
    %v1395 = vsel %vm819, %v1393, 0.0
    %v1396 = vsel %vm820, %v1392, 0.0
    %v1397 = vsel %vm821, %v1391, 0.0
    %v1398 = vsel %vm822, %v1390, 0.0
    %v1399 = vsel %vm823, %v1389, 0.0
    %v1400 = vsel %vm824, %v1388, 0.0
    %v1401 = vsel %vm825, %v1387, 0.0
    %v1402 = vsel %vm826, %v1394, 0.0
    %v1411 = vrot.slane %v1267, 4
    %v1412 = vrot.slane %v1268, 4
    %v1413 = vrot.slane %v1269, 4
    %v1414 = vrot.slane %v1270, 4
    %v1415 = vrot.slane %v1271, 4
    %v1416 = vrot.slane %v1272, 4
    %v1417 = vrot.slane %v1273, 4
    %v1418 = vrot.slane %v1274, 4
    %v1435 = vrot.slane %v1203, 4
    %v1436 = vrot.slane %v1204, 4
    %v1437 = vrot.slane %v1205, 4
    %v1438 = vrot.slane %v1206, 4
    %v1439 = vrot.slane %v1207, 4
    %v1440 = vrot.slane %v1208, 4
    %v1441 = vrot.slane %v1209, 4
    %v1442 = vrot.slane %v1210, 4
    %v1459 = vrot.slane %v1363, 4
    %v1460 = vrot.slane %v1364, 4
    %v1461 = vrot.slane %v1365, 4
    %v1462 = vrot.slane %v1366, 4
    %v1463 = vrot.slane %v1367, 4
    %v1464 = vrot.slane %v1368, 4
    %v1465 = vrot.slane %v1369, 4
    %v1466 = vrot.slane %v1370, 4
    %v1475 = vsel %vm891, %v1235, %v1411
    %v1476 = vsel %vm891, %v1236, %v1412
    %v1477 = vsel %vm891, %v1237, %v1413
    %v1478 = vsel %vm891, %v1238, %v1414
    %v1479 = vsel %vm891, %v1239, %v1415
    %v1480 = vsel %vm891, %v1240, %v1416
    %v1481 = vsel %vm891, %v1241, %v1417
    %v1482 = vsel %vm891, %v1242, %v1418
    %v1483 = vsel %vm891, %v1299, %v1435
    %v1484 = vsel %vm891, %v1300, %v1436
    %v1485 = vsel %vm891, %v1301, %v1437
    %v1486 = vsel %vm891, %v1302, %v1438
    %v1487 = vsel %vm891, %v1303, %v1439
    %v1488 = vsel %vm891, %v1304, %v1440
    %v1489 = vsel %vm891, %v1305, %v1441
    %v1490 = vsel %vm891, %v1306, %v1442
    %v1491 = vsel %vm891, %v1331, %v1459
    %v1492 = vsel %vm891, %v1332, %v1460
    %v1493 = vsel %vm891, %v1333, %v1461
    %v1494 = vsel %vm891, %v1334, %v1462
    %v1495 = vsel %vm891, %v1335, %v1463
    %v1496 = vsel %vm891, %v1336, %v1464
    %v1497 = vsel %vm891, %v1337, %v1465
    %v1498 = vsel %vm891, %v1338, %v1466
    %v1499 = vld [vmem:[%s7] sm:$0xf]
    %v1500 = vld [vmem:[%s8] sm:$0xf]
    %1502 = vset.pattern.permute.xlu0 0
    %1503 = vperm.xlu0 %1502, %v1500
    %v1504 = vpop.permute.xlu0 %1503
    %v1507 = vsel %vm923, %v1499, 0
    %v1510 = vsel %vm891, %v1395, 0
    %v1513 = vsel %vm891, %v1396, 0
    %v1516 = vsel %vm891, %v1397, 0
    %v1519 = vsel %vm891, %v1398, 0
    %v1522 = vsel %vm891, %v1399, 0
    %v1525 = vsel %vm891, %v1400, 0
    %v1528 = vsel %vm891, %v1401, 0
    %v1531 = vsel %vm891, %v1402, 0
    %1533 = vmatpush.msra.mxu0 0.0
    %1534 = vmatpush.msra.mxu0 0.0
    %1535 = vmatpush.msra.mxu0 0.0
    %1536 = vmatpush.msra.mxu0 0.0
    %1537 = vmatpush.msra.mxu0 0.0
    %1538 = vmatpush.msra.mxu0 0.0
    %1539 = vmatpush.msra.mxu0 0.0
    %1540 = vmatpush.msra.mxu0 0.0
    %1541 = vmatpush.msra.mxu0 0.0
    %1542 = vmatpush.msra.mxu0 0.0
    %1543 = vmatpush.msra.mxu0 0.0
    %1544 = vmatpush.msra.mxu0 0.0
    %1545 = vmatpush.msra.mxu0 %v1510
    %1546 = vmatpush.msra.mxu0 %v1491
    %1547 = vmatpush.msra.mxu0 %v1483
    %1548 = vmatpush.msra.mxu0 %v1475
    %1549 = vmatmul.f32.gmra.mxu0 %v1507
    %v1550 = vpop.f32.mrf.mxu0
    %v1551 = vadd.f32 %v1504, %v1550
    %1552 = vdwg.mxu0
    %1553 = vmatpush.msra.mxu0 0.0
    %1554 = vmatpush.msra.mxu0 0.0
    %1555 = vmatpush.msra.mxu0 0.0
    %1556 = vmatpush.msra.mxu0 0.0
    %1557 = vmatpush.msra.mxu0 0.0
    %1558 = vmatpush.msra.mxu0 0.0
    %1559 = vmatpush.msra.mxu0 0.0
    %1560 = vmatpush.msra.mxu0 0.0
    %1561 = vmatpush.msra.mxu0 0.0
    %1562 = vmatpush.msra.mxu0 0.0
    %1563 = vmatpush.msra.mxu0 0.0
    %1564 = vmatpush.msra.mxu0 0.0
    %1565 = vmatpush.msra.mxu0 %v1513
    %1566 = vmatpush.msra.mxu0 %v1492
    %1567 = vmatpush.msra.mxu0 %v1484
    %1568 = vmatpush.msra.mxu0 %v1476
    %1569 = vmatmul.f32.gmra.mxu0 %v1507
    %v1570 = vpop.f32.mrf.mxu0
    %v1571 = vadd.f32 %v1504, %v1570
    %1572 = vdwg.mxu0
    %1573 = vmatpush.msra.mxu0 0.0
    %1574 = vmatpush.msra.mxu0 0.0
    %1575 = vmatpush.msra.mxu0 0.0
    %1576 = vmatpush.msra.mxu0 0.0
    %1577 = vmatpush.msra.mxu0 0.0
    %1578 = vmatpush.msra.mxu0 0.0
    %1579 = vmatpush.msra.mxu0 0.0
    %1580 = vmatpush.msra.mxu0 0.0
    %1581 = vmatpush.msra.mxu0 0.0
    %1582 = vmatpush.msra.mxu0 0.0
    %1583 = vmatpush.msra.mxu0 0.0
    %1584 = vmatpush.msra.mxu0 0.0
    %1585 = vmatpush.msra.mxu0 %v1516
    %1586 = vmatpush.msra.mxu0 %v1493
    %1587 = vmatpush.msra.mxu0 %v1485
    %1588 = vmatpush.msra.mxu0 %v1477
    %1589 = vmatmul.f32.gmra.mxu0 %v1507
    %v1590 = vpop.f32.mrf.mxu0
    %v1591 = vadd.f32 %v1504, %v1590
    %1592 = vdwg.mxu0
    %1593 = vmatpush.msra.mxu0 0.0
    %1594 = vmatpush.msra.mxu0 0.0
    %1595 = vmatpush.msra.mxu0 0.0
    %1596 = vmatpush.msra.mxu0 0.0
    %1597 = vmatpush.msra.mxu0 0.0
    %1598 = vmatpush.msra.mxu0 0.0
    %1599 = vmatpush.msra.mxu0 0.0
    %1600 = vmatpush.msra.mxu0 0.0
    %1601 = vmatpush.msra.mxu0 0.0
    %1602 = vmatpush.msra.mxu0 0.0
    %1603 = vmatpush.msra.mxu0 0.0
    %1604 = vmatpush.msra.mxu0 0.0
    %1605 = vmatpush.msra.mxu0 %v1519
    %1606 = vmatpush.msra.mxu0 %v1494
    %1607 = vmatpush.msra.mxu0 %v1486
    %1608 = vmatpush.msra.mxu0 %v1478
    %1609 = vmatmul.f32.gmra.mxu0 %v1507
    %v1610 = vpop.f32.mrf.mxu0
    %v1611 = vadd.f32 %v1504, %v1610
    %1612 = vdwg.mxu0
    %1613 = vmatpush.msra.mxu0 0.0
    %1614 = vmatpush.msra.mxu0 0.0
    %1615 = vmatpush.msra.mxu0 0.0
    %1616 = vmatpush.msra.mxu0 0.0
    %1617 = vmatpush.msra.mxu0 0.0
    %1618 = vmatpush.msra.mxu0 0.0
    %1619 = vmatpush.msra.mxu0 0.0
    %1620 = vmatpush.msra.mxu0 0.0
    %1621 = vmatpush.msra.mxu0 0.0
    %1622 = vmatpush.msra.mxu0 0.0
    %1623 = vmatpush.msra.mxu0 0.0
    %1624 = vmatpush.msra.mxu0 0.0
    %1625 = vmatpush.msra.mxu0 %v1522
    %1626 = vmatpush.msra.mxu0 %v1495
    %1627 = vmatpush.msra.mxu0 %v1487
    %1628 = vmatpush.msra.mxu0 %v1479
    %1629 = vmatmul.f32.gmra.mxu0 %v1507
    %v1630 = vpop.f32.mrf.mxu0
    %v1631 = vadd.f32 %v1504, %v1630
    %1632 = vdwg.mxu0
    %1633 = vmatpush.msra.mxu0 0.0
    %1634 = vmatpush.msra.mxu0 0.0
    %1635 = vmatpush.msra.mxu0 0.0
    %1636 = vmatpush.msra.mxu0 0.0
    %1637 = vmatpush.msra.mxu0 0.0
    %1638 = vmatpush.msra.mxu0 0.0
    %1639 = vmatpush.msra.mxu0 0.0
    %1640 = vmatpush.msra.mxu0 0.0
    %1641 = vmatpush.msra.mxu0 0.0
    %1642 = vmatpush.msra.mxu0 0.0
    %1643 = vmatpush.msra.mxu0 0.0
    %1644 = vmatpush.msra.mxu0 0.0
    %1645 = vmatpush.msra.mxu0 %v1525
    %1646 = vmatpush.msra.mxu0 %v1496
    %1647 = vmatpush.msra.mxu0 %v1488
    %1648 = vmatpush.msra.mxu0 %v1480
    %1649 = vmatmul.f32.gmra.mxu0 %v1507
    %v1650 = vpop.f32.mrf.mxu0
    %v1651 = vadd.f32 %v1504, %v1650
    %1652 = vdwg.mxu0
    %1653 = vmatpush.msra.mxu0 0.0
    %1654 = vmatpush.msra.mxu0 0.0
    %1655 = vmatpush.msra.mxu0 0.0
    %1656 = vmatpush.msra.mxu0 0.0
    %1657 = vmatpush.msra.mxu0 0.0
    %1658 = vmatpush.msra.mxu0 0.0
    %1659 = vmatpush.msra.mxu0 0.0
    %1660 = vmatpush.msra.mxu0 0.0
    %1661 = vmatpush.msra.mxu0 0.0
    %1662 = vmatpush.msra.mxu0 0.0
    %1663 = vmatpush.msra.mxu0 0.0
    %1664 = vmatpush.msra.mxu0 0.0
    %1665 = vmatpush.msra.mxu0 %v1528
    %1666 = vmatpush.msra.mxu0 %v1497
    %1667 = vmatpush.msra.mxu0 %v1489
    %1668 = vmatpush.msra.mxu0 %v1481
    %1669 = vmatmul.f32.gmra.mxu0 %v1507
    %v1670 = vpop.f32.mrf.mxu0
    %v1671 = vadd.f32 %v1504, %v1670
    %1672 = vdwg.mxu0
    %1673 = vmatpush.msra.mxu0 0.0
    %1674 = vmatpush.msra.mxu0 0.0
    %1675 = vmatpush.msra.mxu0 0.0
    %1676 = vmatpush.msra.mxu0 0.0
    %1677 = vmatpush.msra.mxu0 0.0
    %1678 = vmatpush.msra.mxu0 0.0
    %1679 = vmatpush.msra.mxu0 0.0
    %1680 = vmatpush.msra.mxu0 0.0
    %1681 = vmatpush.msra.mxu0 0.0
    %1682 = vmatpush.msra.mxu0 0.0
    %1683 = vmatpush.msra.mxu0 0.0
    %1684 = vmatpush.msra.mxu0 0.0
    %1685 = vmatpush.msra.mxu0 %v1531
    %1686 = vmatpush.msra.mxu0 %v1498
    %1687 = vmatpush.msra.mxu0 %v1490
    %1688 = vmatpush.msra.mxu0 %v1482
    %1689 = vmatmul.f32.gmra.mxu0 %v1507
    %v1690 = vpop.f32.mrf.mxu0
    %v1691 = vadd.f32 %v1504, %v1690
    %1692 = vdwg.mxu0
    %v1693 = vsel %vm891, %v1551, 0.0
    %v1694 = vsel %vm891, %v1571, 0.0
    %v1695 = vadd.f32 %v1693, %v1694
    %v1696 = vsel %vm891, %v1591, 0.0
    %v1697 = vadd.f32 %v1695, %v1696
    %v1698 = vsel %vm891, %v1611, 0.0
    %v1699 = vadd.f32 %v1697, %v1698
    %v1700 = vsel %vm891, %v1631, 0.0
    %v1701 = vadd.f32 %v1699, %v1700
    %v1702 = vsel %vm891, %v1651, 0.0
    %v1703 = vadd.f32 %v1701, %v1702
    %v1704 = vsel %vm891, %v1671, 0.0
    %v1705 = vadd.f32 %v1703, %v1704
    %v1706 = vsel %vm891, %v1691, 0.0
    %v1707 = vadd.f32 %v1705, %v1706
    %1708 = vadd.xlane.f32.xlu0 %v1707
    %v1709 = vpop.xlane.xlu0 %1708
    %v1710 = vmul.f32 %v1709, 0.0009765625
    %v1711 = vsub.f32 %v1551, %v1710
    %v1712 = vsub.f32 %v1571, %v1710
    %v1713 = vsub.f32 %v1591, %v1710
    %v1714 = vsub.f32 %v1611, %v1710
    %v1715 = vsub.f32 %v1631, %v1710
    %v1716 = vsub.f32 %v1651, %v1710
    %v1717 = vsub.f32 %v1671, %v1710
    %v1718 = vsub.f32 %v1691, %v1710
    %v1719 = vmul.f32 %v1711, %v1711
    %v1720 = vmul.f32 %v1712, %v1712
    %v1721 = vmul.f32 %v1713, %v1713
    %v1722 = vmul.f32 %v1714, %v1714
    %v1723 = vmul.f32 %v1715, %v1715
    %v1724 = vmul.f32 %v1716, %v1716
    %v1725 = vmul.f32 %v1717, %v1717
    %v1726 = vmul.f32 %v1718, %v1718
    %v1727 = vsel %vm891, %v1719, 0.0
    %v1728 = vsel %vm891, %v1720, 0.0
    %v1729 = vadd.f32 %v1727, %v1728
    %v1730 = vsel %vm891, %v1721, 0.0
    %v1731 = vadd.f32 %v1729, %v1730
    %v1732 = vsel %vm891, %v1722, 0.0
    %v1733 = vadd.f32 %v1731, %v1732
    %v1734 = vsel %vm891, %v1723, 0.0
    %v1735 = vadd.f32 %v1733, %v1734
    %v1736 = vsel %vm891, %v1724, 0.0
    %v1737 = vadd.f32 %v1735, %v1736
    %v1738 = vsel %vm891, %v1725, 0.0
    %v1739 = vadd.f32 %v1737, %v1738
    %v1740 = vsel %vm891, %v1726, 0.0
    %v1741 = vadd.f32 %v1739, %v1740
    %1742 = vadd.xlane.f32.xlu0 %v1741
    %v1743 = vpop.xlane.xlu0 %1742
    %v1744 = vmul.f32 %v1743, 0.0009765625
    %v1745 = vld [vmem:[%s9] sm:$0xf]
    %v1746 = vadd.f32 %v1744, 1e-05
    %v1747 = vrsqrt.pop %v1746
    %v1748 = vmul.f32 %v1747, %v1746
    %v1749 = vmul.f32 %v1748, %v1747
    %v1750 = vmul.f32 0.5, %v1749
    %v1751 = vsub.f32 1.5, %v1750
    %v1752 = vmul.f32 %v1747, %v1751
    %vm1753 = vweird.f32 %v1746
    %vm1754 = vweird.f32 %v1747
    %vm1755 = vmor %vm1753, %vm1754
    %v1756 = vsel %vm1755, %v1747, %v1752
    %v1757 = vmul.f32 %v1745, %v1756
    %1759 = vset.pattern.permute.xlu0 0
    %1760 = vperm.xlu0 %1759, %v1757
    %v1761 = vpop.permute.xlu0 %1760
    %v1763 = vmul.f32 %v1711, %v1761
    %v1764 = vmul.f32 %v1712, %v1761
    %v1765 = vmul.f32 %v1713, %v1761
    %v1766 = vmul.f32 %v1714, %v1761
    %v1767 = vmul.f32 %v1715, %v1761
    %v1768 = vmul.f32 %v1716, %v1761
    %v1769 = vmul.f32 %v1717, %v1761
    %v1770 = vmul.f32 %v1718, %v1761
    %v1771 = vld [vmem:[%s10] sm:$0xf]
    %1773 = vset.pattern.permute.xlu0 0
    %1774 = vperm.xlu0 %1773, %v1771
    %v1775 = vpop.permute.xlu0 %1774
    %v1777 = vadd.f32 %v1763, %v1775
    %v1778 = vadd.f32 %v1764, %v1775
    %v1779 = vadd.f32 %v1765, %v1775
    %v1780 = vadd.f32 %v1766, %v1775
    %v1781 = vadd.f32 %v1767, %v1775
    %v1782 = vadd.f32 %v1768, %v1775
    %v1783 = vadd.f32 %v1769, %v1775
    %v1784 = vadd.f32 %v1770, %v1775
    %v1785 = vmax.f32 %v1777, 0.0
    %v1786 = vmax.f32 %v1778, 0.0
    %v1787 = vmax.f32 %v1779, 0.0
    %v1788 = vmax.f32 %v1780, 0.0
    %v1789 = vmax.f32 %v1781, 0.0
    %v1790 = vmax.f32 %v1782, 0.0
    %v1791 = vmax.f32 %v1783, 0.0
    %v1792 = vmax.f32 %v1784, 0.0
    %v1801 = vrot.slane %v1786, 4
    %v1802 = vrot.slane %v1788, 4
    %v1803 = vrot.slane %v1790, 4
    %v1804 = vrot.slane %v1792, 4
    %v1805 = vsel %vm891, %v1785, %v1801
    %v1806 = vsel %vm891, %v1787, %v1802
    %v1807 = vsel %vm891, %v1789, %v1803
    %v1808 = vsel %vm891, %v1791, %v1804
    %1813 = vst [vmem:[#allocation8] sm:$0xff] %v1805
    %1814 = vst [vmem:[#allocation8 + $0x8] sm:$0xff] %v1806
    %1815 = vst [vmem:[#allocation8 + $0x10] sm:$0xff] %v1807
    %1816 = vst [vmem:[#allocation8 + $0x18] sm:$0xff] %v1808
    // Predicated region
    $region58: #{tpu_custom_call.1} parent=1 // pred_check
      _
    $region59: #{tpu_custom_call.1} parent=1 // pred_check_branch
      %1818 = sbr.rel (0) target = $region61
    $region60: #{tpu_custom_call.1} parent=1 // pred_region
      %1820 = vsyncadd [#allocation4], 0
      %s1822 = sshll.u32 [#allocation8], 4
      %s1823 = int_to_ptr.vmem [resolvable:$true] %s1822
      %s1824 = sshll.u32 %s11, 4
      %s1825 = int_to_ptr.hbm [resolvable:$true] %s1824
      %1827 = dma.vmem_to_hbm [thread:$0]  %s1823, 512, %s1825, [#allocation4]
    $region61: #{tpu_custom_call.1} parent=1 // pred_fallthru
      _
    // Predicated region
    $region62: #{tpu_custom_call.1} parent=1 // pred_check
      _
    $region63: #{tpu_custom_call.1} parent=1 // pred_check_branch
      %1829 = sbr.rel (0) target = $region65
    $region64: #{tpu_custom_call.1} parent=1 // pred_region
      %1831 = dma.done [#allocation4], 512
    $region65: #{tpu_custom_call.1} parent=1 // pred_fallthru
      _
    %1832 = vsyncpa [#allocation3], 1
    %1833 = vsyncpa [#allocation6], 1
    %1834 = vsyncpa [#allocation4], 1

</llo_original>
